<compile_context>
chip_gen: v7x
topology: tpu7x:2x2x1
jax: 0.10.0
libtpu: 0.0.40
codegen_flags: <defaults>
</compile_context>

<pallas_src>
import functools

import jax
import jax.numpy as jnp
from jax.experimental import pallas as pl
from jax.experimental.pallas import tpu as pltpu
import numpy as np


# ----------------------------------------------------------------------------
# Hypernetworks (WeightModel / BiasModel) — plain JAX parameter setup
# ----------------------------------------------------------------------------
def _init_linear(key, in_f, out_f, std):
    kw, kb = jax.random.split(key)
    W = std * jax.random.normal(kw, (in_f, out_f), jnp.float32)
    b = std * jax.random.normal(kb, (out_f,), jnp.float32)
    return W, b


def _relu6(x):
    return jnp.clip(x, 0.0, 6.0)


def _mlp_apply(x, params):
    n = len(params)
    for i, (W, b) in enumerate(params):
        x = x @ W + b
        if i < n - 1:
            x = _relu6(x)
    return x


def make_weight_model(key, in_ch, out_ch, in_dim, out_dim, hidden_size):
    # WeightModel: 8 linears in c_model, 8 linears in s_model, std=0.02
    std = 0.02
    keys = jax.random.split(key, 16)
    c_dims = [(in_ch, 2 * in_ch)] + [(2 * in_ch, 2 * in_ch)] * 6 + [(2 * in_ch, out_ch)]
    s_dims = [(in_dim, hidden_size)] + [(hidden_size, hidden_size)] * 6 + [(hidden_size, out_dim)]
    c_params = [_init_linear(keys[i], a, b, std) for i, (a, b) in enumerate(c_dims)]
    s_params = [_init_linear(keys[8 + i], a, b, std) for i, (a, b) in enumerate(s_dims)]
    return {"c": c_params, "s": s_params}


def make_bias_model(key, in_ch, out_ch, in_dim, out_dim, hidden_size):
    # BiasModel: 3 linears in c_model, 3 linears in s_model, std=0.01
    std = 0.01
    keys = jax.random.split(key, 6)
    c_dims = [(in_ch, 2 * in_ch), (2 * in_ch, 2 * in_ch), (2 * in_ch, out_ch)]
    s_dims = [(in_dim, hidden_size), (hidden_size, hidden_size), (hidden_size, out_dim)]
    c_params = [_init_linear(keys[i], a, b, std) for i, (a, b) in enumerate(c_dims)]
    s_params = [_init_linear(keys[3 + i], a, b, std) for i, (a, b) in enumerate(s_dims)]
    return {"c": c_params, "s": s_params}


def apply_hyper(params, z):
    # z: (B, z_ch, in_dim) -> (B, out_ch, out_dim)   (mirrors the PyTorch permutes)
    y = _mlp_apply(z, params["s"])        # (B, z_ch, out_dim)
    y = jnp.transpose(y, (0, 2, 1))       # (B, out_dim, z_ch)
    y = _mlp_apply(y, params["c"])        # (B, out_dim, out_ch)
    return jnp.transpose(y, (0, 2, 1))    # (B, out_ch, out_dim)


# ----------------------------------------------------------------------------
# Pallas GRU recurrence kernel
# ----------------------------------------------------------------------------
def gru_kernel(x_ref, h0_ref, wih_ref, whh_ref, bih_ref, bhh_ref,
               out_ref, h_ref, *, TC, H, reverse):
    # Per-grid-step (batch-block b, time-chunk j) block shapes:
    #   x_ref   : (BB, TC, C_in)   compute dtype (f32 or bf16)
    #   h0_ref  : (BB, 1, H)       f32
    #   wih_ref : (BB, C_in, 3H)   compute dtype (gate-packed: reset|update|new)
    #   whh_ref : (BB, H, 3H)      compute dtype (gate-packed)
    #   bih_ref : (BB, 1, 3H)      f32
    #   bhh_ref : (BB, 1, 3H)      f32
    #   out_ref : (BB, TC, H)      f32
    #   h_ref   : VMEM (BB, 1, H)  f32 — hidden state carried across time chunks

    # New batch block (first time chunk of this b): load the initial state.
    @pl.when(pl.program_id(1) == 0)
    def _():
        h_ref[...] = h0_ref[...]

    # Gate-fused input projection for the whole chunk — a single batched MXU
    # pass (all three gates packed along the lane axis), hoisted off the
    # serial recurrence.  Accumulate in f32.
    xp = jnp.tanh(
        jnp.einsum('btc,bch->bth', x_ref[...], wih_ref[...],
                   preferred_element_type=jnp.float32) + bih_ref[...])     # (BB, TC, 3H) f32

    whh = whh_ref[...]                    # (BB, H, 3H), loaded once per chunk
    bhh = bhh_ref[...]                    # (BB, 1, 3H) f32
    mm_dtype = whh.dtype

    # Hidden state stays in (BB, 1, H) shape end-to-end: no per-step
    # expand/squeeze relayouts on the serial critical path.
    h = h_ref[...]                        # (BB, 1, H) f32

    # Static, fully unrolled chunk loop (TC <= 16): all slice/store indices are
    # static; the grid step bounds live ranges; the LLO scheduler can overlap
    # MXU/EUP/VPU/store work across adjacent timesteps.
    steps = range(TC - 1, -1, -1) if reverse else range(TC)
    for t in steps:
        # Single gate-fused recurrent matmul per timestep.
        hp = jnp.tanh(
            jnp.einsum('bih,bhk->bik', h.astype(mm_dtype), whh,
                       preferred_element_type=jnp.float32) + bhh)          # (BB, 1, 3H) f32
        xt = xp[:, t:t + 1, :]                                             # (BB, 1, 3H), static slice

        reset_gate = jax.nn.sigmoid(xt[..., :H] + hp[..., :H])
        update_gate = jax.nn.sigmoid(xt[..., H:2 * H] + hp[..., H:2 * H])
        new_gate = jnp.tanh(xt[..., 2 * H:] + reset_gate * hp[..., 2 * H:])

        h = update_gate * h + (1.0 - update_gate) * new_gate               # (BB, 1, H) f32
        # Static-index store; the chunk's HBM writeback is one bulk DMA.
        # (For H >= 128 these stores are unmasked / lane-dense.)
        out_ref[:, t:t + 1, :] = h.astype(out_ref.dtype)

    # Persist hidden state for the next time chunk of this batch block.
    h_ref[...] = h


def _choose_bb(B):
    # BB <= 8 (fill sublanes) while keeping NB = ceil(B/BB) >= 2 whenever
    # possible so the "parallel" batch grid axis feeds both TensorCores (v7x).
    if B <= 1:
        return 1
    return min(8, -(-B // 2))


def _choose_tc(T):
    # Time-chunk length: multiple of 8 (sublane-aligned block) and <= 16 so the
    # in-kernel chunk loop can be fully unrolled without inflating live ranges.
    for cand in (16, 8):
        if T % cand == 0:
            return cand
    # Fallback: single full-T chunk (block dim == full array dim is allowed).
    return T


def _pad_batch(a, B_pad):
    B = a.shape[0]
    if B == B_pad:
        return a
    pad = [(0, B_pad - B)] + [(0, 0)] * (a.ndim - 1)
    return jnp.pad(a, pad)


def gru_forward(x_nct, h0, W_ih, W_hh, b_ih, b_hh, reverse=False,
                compute_dtype=jnp.float32):
    """x_nct: (B, C_in, T); h0: (B, 1, H); returns (B, H, T) (PyTorch layout).

    compute_dtype controls the MXU operand dtype (x, W_ih, W_hh).  Accumulation,
    biases, the hidden state and all gate math stay float32.
    """
    B, C_in, T = x_nct.shape
    H = h0.shape[-1]

    BB = _choose_bb(B)
    B_pad = int(pl.cdiv(B, BB)) * BB
    NB = B_pad // BB
    TC = _choose_tc(T)
    NT = T // TC

    # ---- layout plumbing (plain XLA, outside the kernel) --------------------
    # TODO(synk): the x transpose could be folded into the kernel as a
    # transposed-LHS contraction ('bct,bch->bth'); kept in XLA for robust
    # dot_general lowering — it is a one-time relayout of the C_in-wide input.
    x_btc = _pad_batch(jnp.transpose(x_nct, (0, 2, 1)), B_pad).astype(compute_dtype)
    h0_p = _pad_batch(h0, B_pad).astype(jnp.float32)                 # (B_pad, 1, H)
    # Gate packing (reset|update|new along the last dim) matches PyTorch's
    # chunk(3, -1) layout, so the hypernetwork outputs are used as-is.
    wih = _pad_batch(W_ih, B_pad).astype(compute_dtype)              # (B_pad, C_in, 3H)
    whh = _pad_batch(W_hh, B_pad).astype(compute_dtype)              # (B_pad, H, 3H)
    bih = _pad_batch(b_ih, B_pad).astype(jnp.float32)                # (B_pad, 1, 3H)
    bhh = _pad_batch(b_hh, B_pad).astype(jnp.float32)                # (B_pad, 1, 3H)

    # Generation-aware VMEM limit: never the full physical VMEM (v7x has only
    # 64 MiB per TensorCore); leave headroom for double-buffered blocks.
    try:
        vmem_cap = int(pltpu.get_tpu_info().vmem_capacity_bytes)
    except Exception:
        vmem_cap = 64 * 1024 * 1024
    vmem_limit = int(min((vmem_cap * 3) // 4, 96 * 1024 * 1024))

    if reverse:
        t_imap = lambda b, j: (b, NT - 1 - j, 0)      # process last chunk first
    else:
        t_imap = lambda b, j: (b, j, 0)

    kernel = functools.partial(gru_kernel, TC=TC, H=H, reverse=bool(reverse))

    out = pl.pallas_call(
        kernel,
        out_shape=jax.ShapeDtypeStruct((B_pad, T, H), jnp.float32),
        grid_spec=pltpu.PrefetchScalarGridSpec(
            num_scalar_prefetch=0,
            grid=(NB, NT),
            in_specs=[
                pl.BlockSpec((BB, TC, C_in), t_imap),
                pl.BlockSpec((BB, 1, H), lambda b, j: (b, 0, 0)),
                pl.BlockSpec((BB, C_in, 3 * H), lambda b, j: (b, 0, 0)),
                pl.BlockSpec((BB, H, 3 * H), lambda b, j: (b, 0, 0)),
                pl.BlockSpec((BB, 1, 3 * H), lambda b, j: (b, 0, 0)),
                pl.BlockSpec((BB, 1, 3 * H), lambda b, j: (b, 0, 0)),
            ],
            out_specs=pl.BlockSpec((BB, TC, H), t_imap),
            scratch_shapes=[
                pltpu.VMEM((BB, 1, H), jnp.float32),   # hidden state carried across time chunks
            ],
        ),
        compiler_params=pltpu.CompilerParams(
            dimension_semantics=("parallel", "arbitrary"),
            vmem_limit_bytes=vmem_limit),
    )(x_btc, h0_p, wih, whh, bih, bhh)

    # (B_pad, T, H) -> drop batch padding -> (B, H, T)   (pure layout, in XLA)
    out = out[:B]
    return jnp.transpose(out, (0, 2, 1))


# ----------------------------------------------------------------------------
# Pure-JAX reference (mirrors PyTorch GRUCell.forward, incl. reverse)
# ----------------------------------------------------------------------------
def gru_ref(x_nct, h0, W_ih, W_hh, b_ih, b_hh, reverse=False):
    B, C, T = x_nct.shape
    H = h0.shape[-1]
    xs = jnp.transpose(x_nct, (0, 2, 1))
    h = h0
    outs = [None] * T
    order = range(T - 1, -1, -1) if reverse else range(T)
    for t in order:
        xt_in = xs[:, t:t + 1, :]
        xt = jnp.tanh(jnp.einsum('bic,bcd->bid', xt_in, W_ih) + b_ih)
        ht = jnp.tanh(jnp.einsum('bih,bhd->bid', h, W_hh) + b_hh)
        x_r, x_u, x_n = xt[..., :H], xt[..., H:2 * H], xt[..., 2 * H:]
        h_r, h_u, h_n = ht[..., :H], ht[..., H:2 * H], ht[..., 2 * H:]
        r = jax.nn.sigmoid(x_r + h_r)
        u = jax.nn.sigmoid(x_u + h_u)
        n = jnp.tanh(x_n + r * h_n)
        h = u * h + (1.0 - u) * n
        outs[t] = h
    return jnp.transpose(jnp.concatenate(outs, axis=1), (0, 2, 1))


# ----------------------------------------------------------------------------
if __name__ == "__main__":
    # Small, module-consistent shapes
    B = 2
    in_ch = 4          # layer_num == 0  ->  W_ih out_ch == in_ch
    hidden_ch = 8
    z_ch = 4
    input_size = 16    # in_dim of the hypernetworks (last dim of z)
    hidden_size = 32   # hidden width of the hypernetworks
    T = 8              # sequence length
    T_long = 32        # exercises the time-chunked (NT > 1) path

    key = jax.random.PRNGKey(0)
    k_wih, k_whh, k_bih, k_bhh, k_z, k_x, k_x2, k_h = jax.random.split(key, 8)

    # Hypernetwork parameters (deterministic, normal init like the module)
    wih_model = make_weight_model(k_wih, z_ch, in_ch, input_size, 3 * hidden_ch, hidden_size)
    whh_model = make_weight_model(k_whh, z_ch, hidden_ch, input_size, 3 * hidden_ch, hidden_size)
    bih_model = make_bias_model(k_bih, z_ch, 1, input_size, 3 * hidden_ch, hidden_size)
    bhh_model = make_bias_model(k_bhh, z_ch, 1, input_size, 3 * hidden_ch, hidden_size)

    # Inputs
    z = jax.random.normal(k_z, (B, z_ch, input_size), jnp.float32)
    x = jax.random.normal(k_x, (B, in_ch, T), jnp.float32)          # PyTorch NCT layout
    x_long = jax.random.normal(k_x2, (B, in_ch, T_long), jnp.float32)
    h0 = jax.random.normal(k_h, (B, 1, hidden_ch), jnp.float32)

    # set_weight(z)
    W_ih = apply_hyper(wih_model, z)   # (B, in_ch, 3*hidden_ch)
    W_hh = apply_hyper(whh_model, z)   # (B, hidden_ch, 3*hidden_ch)
    b_ih = apply_hyper(bih_model, z)   # (B, 1, 3*hidden_ch)
    b_hh = apply_hyper(bhh_model, z)   # (B, 1, 3*hidden_ch)

    # Forward / reverse, short sequence (single time chunk)
    out_f = jax.block_until_ready(gru_forward(x, h0, W_ih, W_hh, b_ih, b_hh, reverse=False))
    ref_f = gru_ref(x, h0, W_ih, W_hh, b_ih, b_hh, reverse=False)
    assert out_f.shape == (B, hidden_ch, T), out_f.shape
    np.testing.assert_allclose(np.asarray(out_f), np.asarray(ref_f), rtol=1e-4, atol=1e-4)

    out_r = jax.block_until_ready(gru_forward(x, h0, W_ih, W_hh, b_ih, b_hh, reverse=True))
    ref_r = gru_ref(x, h0, W_ih, W_hh, b_ih, b_hh, reverse=True)
    np.testing.assert_allclose(np.asarray(out_r), np.asarray(ref_r), rtol=1e-4, atol=1e-4)

    # Forward / reverse, longer sequence (NT = 2 time chunks, carried hidden state)
    out_lf = jax.block_until_ready(gru_forward(x_long, h0, W_ih, W_hh, b_ih, b_hh, reverse=False))
    ref_lf = gru_ref(x_long, h0, W_ih, W_hh, b_ih, b_hh, reverse=False)
    np.testing.assert_allclose(np.asarray(out_lf), np.asarray(ref_lf), rtol=1e-4, atol=1e-4)

    out_lr = jax.block_until_ready(gru_forward(x_long, h0, W_ih, W_hh, b_ih, b_hh, reverse=True))
    ref_lr = gru_ref(x_long, h0, W_ih, W_hh, b_ih, b_hh, reverse=True)
    np.testing.assert_allclose(np.asarray(out_lr), np.asarray(ref_lr), rtol=1e-4, atol=1e-4)

    # bf16 MXU-operand path (f32 accumulation / gate math) — sanity check only
    out_bf = jax.block_until_ready(
        gru_forward(x_long, h0, W_ih, W_hh, b_ih, b_hh, reverse=False,
                    compute_dtype=jnp.bfloat16))
    np.testing.assert_allclose(np.asarray(out_bf), np.asarray(ref_lf), rtol=1e-1, atol=5e-2)

    print("KERNEL_OK")
</pallas_src>

<mosaic_0001>
module attributes {stable_mosaic.version = 11 : i64} {
  func.func @gru_kernel(%arg0: i32, %arg1: i32, %arg2: memref<1x8x4xf32, #tpu.memory_space<vmem>>, %arg3: memref<1x1x8xf32, #tpu.memory_space<vmem>>, %arg4: memref<1x4x24xf32, #tpu.memory_space<vmem>>, %arg5: memref<1x8x24xf32, #tpu.memory_space<vmem>>, %arg6: memref<1x1x24xf32, #tpu.memory_space<vmem>>, %arg7: memref<1x1x24xf32, #tpu.memory_space<vmem>>, %arg8: memref<1x8x8xf32, #tpu.memory_space<vmem>>, %arg9: memref<1x1x8xf32, #tpu.memory_space<vmem>>) attributes {dimension_semantics = [#tpu.dimension_semantics<parallel>, #tpu.dimension_semantics<arbitrary>], iteration_bounds = array<i64: 2, 1>, scalar_prefetch = 0 : i64, scratch_operands = 1 : i64, tpu.core_type = #tpu.core_type<tc>, window_params = [{transform_indices = @transform_0, window_bounds = array<i64: 1, 8, 4>}, {transform_indices = @transform_1, window_bounds = array<i64: 1, 1, 8>}, {transform_indices = @transform_2, window_bounds = array<i64: 1, 4, 24>}, {transform_indices = @transform_3, window_bounds = array<i64: 1, 8, 24>}, {transform_indices = @transform_4, window_bounds = array<i64: 1, 1, 24>}, {transform_indices = @transform_5, window_bounds = array<i64: 1, 1, 24>}, {transform_indices = @transform_6, window_bounds = array<i64: 1, 8, 8>}]} {
    %c0_i32 = arith.constant 0 : i32
    %0 = arith.cmpi eq, %arg1, %c0_i32 : i32
    %1 = arith.extui %0 : i1 to i32
    %c0_i32_0 = arith.constant 0 : i32
    %2 = arith.cmpi ne, %1, %c0_i32_0 : i32
    scf.if %2 {
      %c0_70 = arith.constant 0 : index
      %c0_71 = arith.constant 0 : index
      %c0_72 = arith.constant 0 : index
      %262 = vector.load %arg3[%c0_70, %c0_71, %c0_72] : memref<1x1x8xf32, #tpu.memory_space<vmem>>, vector<1x1x8xf32>
      %c0_73 = arith.constant 0 : index
      %c0_74 = arith.constant 0 : index
      %c0_75 = arith.constant 0 : index
      %263 = vector.load %arg9[%c0_73, %c0_74, %c0_75] : memref<1x1x8xf32, #tpu.memory_space<vmem>>, vector<1x1x8xf32>
      tpu.vector_store %arg9[%c0_73, %c0_74, %c0_75], %262 {strides = array<i32>} : memref<1x1x8xf32, #tpu.memory_space<vmem>>, vector<1x1x8xf32>,
    } else {
    }
    %c0 = arith.constant 0 : index
    %c0_1 = arith.constant 0 : index
    %c0_2 = arith.constant 0 : index
    %3 = vector.load %arg2[%c0, %c0_1, %c0_2] : memref<1x8x4xf32, #tpu.memory_space<vmem>>, vector<1x8x4xf32>
    %c0_3 = arith.constant 0 : index
    %c0_4 = arith.constant 0 : index
    %c0_5 = arith.constant 0 : index
    %4 = vector.load %arg4[%c0_3, %c0_4, %c0_5] : memref<1x4x24xf32, #tpu.memory_space<vmem>>, vector<1x4x24xf32>
    "tpu.trace_start"() <{level = 10 : i32, message = "btc,bch->bth"}> : () -> ()
    %cst = arith.constant dense<0.000000e+00> : vector<1x8x24xf32>
    %5 = tpu.matmul %3, %4, %cst {dimension_numbers = #tpu.dot_dimension_numbers<[2], [1], [1], [2], [0, 0, 0, 1, 1, 2], [0], [0]>} : vector<1x8x4xf32>, vector<1x4x24xf32>, vector<1x8x24xf32> -> vector<1x8x24xf32>
    "tpu.trace_stop"() : () -> ()
    %c0_6 = arith.constant 0 : index
    %c0_7 = arith.constant 0 : index
    %c0_8 = arith.constant 0 : index
    %6 = vector.load %arg6[%c0_6, %c0_7, %c0_8] : memref<1x1x24xf32, #tpu.memory_space<vmem>>, vector<1x1x24xf32>
    %7 = vector.broadcast %6 : vector<1x1x24xf32> to vector<1x8x24xf32>
    %8 = arith.addf %5, %7 : vector<1x8x24xf32>
    %9 = math.tanh %8 : vector<1x8x24xf32>
    %c0_9 = arith.constant 0 : index
    %c0_10 = arith.constant 0 : index
    %c0_11 = arith.constant 0 : index
    %10 = vector.load %arg5[%c0_9, %c0_10, %c0_11] : memref<1x8x24xf32, #tpu.memory_space<vmem>>, vector<1x8x24xf32>
    %c0_12 = arith.constant 0 : index
    %c0_13 = arith.constant 0 : index
    %c0_14 = arith.constant 0 : index
    %11 = vector.load %arg7[%c0_12, %c0_13, %c0_14] : memref<1x1x24xf32, #tpu.memory_space<vmem>>, vector<1x1x24xf32>
    %c0_15 = arith.constant 0 : index
    %c0_16 = arith.constant 0 : index
    %c0_17 = arith.constant 0 : index
    %12 = vector.load %arg9[%c0_15, %c0_16, %c0_17] : memref<1x1x8xf32, #tpu.memory_space<vmem>>, vector<1x1x8xf32>
    "tpu.trace_start"() <{level = 10 : i32, message = "bih,bhk->bik"}> : () -> ()
    %cst_18 = arith.constant dense<0.000000e+00> : vector<1x1x24xf32>
    %13 = tpu.matmul %12, %10, %cst_18 {dimension_numbers = #tpu.dot_dimension_numbers<[2], [1], [1], [2], [0, 0, 0, 1, 1, 2], [0], [0]>} : vector<1x1x8xf32>, vector<1x8x24xf32>, vector<1x1x24xf32> -> vector<1x1x24xf32>
    "tpu.trace_stop"() : () -> ()
    %14 = arith.addf %13, %11 : vector<1x1x24xf32>
    %15 = math.tanh %14 : vector<1x1x24xf32>
    %16 = vector.extract_strided_slice %9 {offsets = [0, 0, 0], sizes = [1, 1, 24], strides = [1, 1, 1]} : vector<1x8x24xf32> to vector<1x1x24xf32>
    %17 = vector.extract_strided_slice %16 {offsets = [0, 0, 0], sizes = [1, 1, 8], strides = [1, 1, 1]} : vector<1x1x24xf32> to vector<1x1x8xf32>
    %18 = vector.extract_strided_slice %15 {offsets = [0, 0, 0], sizes = [1, 1, 8], strides = [1, 1, 1]} : vector<1x1x24xf32> to vector<1x1x8xf32>
    %19 = arith.addf %17, %18 : vector<1x1x8xf32>
    %20 = arith.negf %19 : vector<1x1x8xf32>
    %21 = math.exp %20 : vector<1x1x8xf32>
    %cst_19 = arith.constant 1.000000e+00 : f32
    %22 = vector.broadcast %cst_19 : f32 to vector<1x1x8xf32>
    %23 = arith.addf %22, %21 : vector<1x1x8xf32>
    %24 = arith.divf %22, %23 : vector<1x1x8xf32>
    %25 = vector.extract_strided_slice %16 {offsets = [0, 0, 8], sizes = [1, 1, 8], strides = [1, 1, 1]} : vector<1x1x24xf32> to vector<1x1x8xf32>
    %26 = vector.extract_strided_slice %15 {offsets = [0, 0, 8], sizes = [1, 1, 8], strides = [1, 1, 1]} : vector<1x1x24xf32> to vector<1x1x8xf32>
    %27 = arith.addf %25, %26 : vector<1x1x8xf32>
    %28 = arith.negf %27 : vector<1x1x8xf32>
    %29 = math.exp %28 : vector<1x1x8xf32>
    %cst_20 = arith.constant 1.000000e+00 : f32
    %30 = vector.broadcast %cst_20 : f32 to vector<1x1x8xf32>
    %31 = arith.addf %30, %29 : vector<1x1x8xf32>
    %32 = arith.divf %30, %31 : vector<1x1x8xf32>
    %33 = vector.extract_strided_slice %16 {offsets = [0, 0, 16], sizes = [1, 1, 8], strides = [1, 1, 1]} : vector<1x1x24xf32> to vector<1x1x8xf32>
    %34 = vector.extract_strided_slice %15 {offsets = [0, 0, 16], sizes = [1, 1, 8], strides = [1, 1, 1]} : vector<1x1x24xf32> to vector<1x1x8xf32>
    %35 = arith.mulf %24, %34 : vector<1x1x8xf32>
    %36 = arith.addf %33, %35 : vector<1x1x8xf32>
    %37 = math.tanh %36 : vector<1x1x8xf32>
    %38 = arith.mulf %32, %12 : vector<1x1x8xf32>
    %cst_21 = arith.constant 1.000000e+00 : f32
    %39 = vector.broadcast %cst_21 : f32 to vector<1x1x8xf32>
    %40 = arith.subf %39, %32 : vector<1x1x8xf32>
    %41 = arith.mulf %40, %37 : vector<1x1x8xf32>
    %42 = arith.addf %38, %41 : vector<1x1x8xf32>
    %c0_22 = arith.constant 0 : index
    %c0_23 = arith.constant 0 : index
    %c0_24 = arith.constant 0 : index
    %43 = vector.load %arg8[%c0_22, %c0_23, %c0_24] : memref<1x8x8xf32, #tpu.memory_space<vmem>>, vector<1x1x8xf32>
    tpu.vector_store %arg8[%c0_22, %c0_23, %c0_24], %42 {strides = array<i32>} : memref<1x8x8xf32, #tpu.memory_space<vmem>>, vector<1x1x8xf32>,
    "tpu.trace_start"() <{level = 10 : i32, message = "bih,bhk->bik"}> : () -> ()
    %cst_25 = arith.constant dense<0.000000e+00> : vector<1x1x24xf32>
    %44 = tpu.matmul %42, %10, %cst_25 {dimension_numbers = #tpu.dot_dimension_numbers<[2], [1], [1], [2], [0, 0, 0, 1, 1, 2], [0], [0]>} : vector<1x1x8xf32>, vector<1x8x24xf32>, vector<1x1x24xf32> -> vector<1x1x24xf32>
    "tpu.trace_stop"() : () -> ()
    %45 = arith.addf %44, %11 : vector<1x1x24xf32>
    %46 = math.tanh %45 : vector<1x1x24xf32>
    %47 = vector.extract_strided_slice %9 {offsets = [0, 1, 0], sizes = [1, 1, 24], strides = [1, 1, 1]} : vector<1x8x24xf32> to vector<1x1x24xf32>
    %48 = vector.extract_strided_slice %47 {offsets = [0, 0, 0], sizes = [1, 1, 8], strides = [1, 1, 1]} : vector<1x1x24xf32> to vector<1x1x8xf32>
    %49 = vector.extract_strided_slice %46 {offsets = [0, 0, 0], sizes = [1, 1, 8], strides = [1, 1, 1]} : vector<1x1x24xf32> to vector<1x1x8xf32>
    %50 = arith.addf %48, %49 : vector<1x1x8xf32>
    %51 = arith.negf %50 : vector<1x1x8xf32>
    %52 = math.exp %51 : vector<1x1x8xf32>
    %cst_26 = arith.constant 1.000000e+00 : f32
    %53 = vector.broadcast %cst_26 : f32 to vector<1x1x8xf32>
    %54 = arith.addf %53, %52 : vector<1x1x8xf32>
    %55 = arith.divf %53, %54 : vector<1x1x8xf32>
    %56 = vector.extract_strided_slice %47 {offsets = [0, 0, 8], sizes = [1, 1, 8], strides = [1, 1, 1]} : vector<1x1x24xf32> to vector<1x1x8xf32>
    %57 = vector.extract_strided_slice %46 {offsets = [0, 0, 8], sizes = [1, 1, 8], strides = [1, 1, 1]} : vector<1x1x24xf32> to vector<1x1x8xf32>
    %58 = arith.addf %56, %57 : vector<1x1x8xf32>
    %59 = arith.negf %58 : vector<1x1x8xf32>
    %60 = math.exp %59 : vector<1x1x8xf32>
    %cst_27 = arith.constant 1.000000e+00 : f32
    %61 = vector.broadcast %cst_27 : f32 to vector<1x1x8xf32>
    %62 = arith.addf %61, %60 : vector<1x1x8xf32>
    %63 = arith.divf %61, %62 : vector<1x1x8xf32>
    %64 = vector.extract_strided_slice %47 {offsets = [0, 0, 16], sizes = [1, 1, 8], strides = [1, 1, 1]} : vector<1x1x24xf32> to vector<1x1x8xf32>
    %65 = vector.extract_strided_slice %46 {offsets = [0, 0, 16], sizes = [1, 1, 8], strides = [1, 1, 1]} : vector<1x1x24xf32> to vector<1x1x8xf32>
    %66 = arith.mulf %55, %65 : vector<1x1x8xf32>
    %67 = arith.addf %64, %66 : vector<1x1x8xf32>
    %68 = math.tanh %67 : vector<1x1x8xf32>
    %69 = arith.mulf %63, %42 : vector<1x1x8xf32>
    %cst_28 = arith.constant 1.000000e+00 : f32
    %70 = vector.broadcast %cst_28 : f32 to vector<1x1x8xf32>
    %71 = arith.subf %70, %63 : vector<1x1x8xf32>
    %72 = arith.mulf %71, %68 : vector<1x1x8xf32>
    %73 = arith.addf %69, %72 : vector<1x1x8xf32>
    %c0_29 = arith.constant 0 : index
    %c1 = arith.constant 1 : index
    %c0_30 = arith.constant 0 : index
    %74 = vector.load %arg8[%c0_29, %c1, %c0_30] : memref<1x8x8xf32, #tpu.memory_space<vmem>>, vector<1x1x8xf32>
    tpu.vector_store %arg8[%c0_29, %c1, %c0_30], %73 {strides = array<i32>} : memref<1x8x8xf32, #tpu.memory_space<vmem>>, vector<1x1x8xf32>,
    "tpu.trace_start"() <{level = 10 : i32, message = "bih,bhk->bik"}> : () -> ()
    %cst_31 = arith.constant dense<0.000000e+00> : vector<1x1x24xf32>
    %75 = tpu.matmul %73, %10, %cst_31 {dimension_numbers = #tpu.dot_dimension_numbers<[2], [1], [1], [2], [0, 0, 0, 1, 1, 2], [0], [0]>} : vector<1x1x8xf32>, vector<1x8x24xf32>, vector<1x1x24xf32> -> vector<1x1x24xf32>
    "tpu.trace_stop"() : () -> ()
    %76 = arith.addf %75, %11 : vector<1x1x24xf32>
    %77 = math.tanh %76 : vector<1x1x24xf32>
    %78 = vector.extract_strided_slice %9 {offsets = [0, 2, 0], sizes = [1, 1, 24], strides = [1, 1, 1]} : vector<1x8x24xf32> to vector<1x1x24xf32>
    %79 = vector.extract_strided_slice %78 {offsets = [0, 0, 0], sizes = [1, 1, 8], strides = [1, 1, 1]} : vector<1x1x24xf32> to vector<1x1x8xf32>
    %80 = vector.extract_strided_slice %77 {offsets = [0, 0, 0], sizes = [1, 1, 8], strides = [1, 1, 1]} : vector<1x1x24xf32> to vector<1x1x8xf32>
    %81 = arith.addf %79, %80 : vector<1x1x8xf32>
    %82 = arith.negf %81 : vector<1x1x8xf32>
    %83 = math.exp %82 : vector<1x1x8xf32>
    %cst_32 = arith.constant 1.000000e+00 : f32
    %84 = vector.broadcast %cst_32 : f32 to vector<1x1x8xf32>
    %85 = arith.addf %84, %83 : vector<1x1x8xf32>
    %86 = arith.divf %84, %85 : vector<1x1x8xf32>
    %87 = vector.extract_strided_slice %78 {offsets = [0, 0, 8], sizes = [1, 1, 8], strides = [1, 1, 1]} : vector<1x1x24xf32> to vector<1x1x8xf32>
    %88 = vector.extract_strided_slice %77 {offsets = [0, 0, 8], sizes = [1, 1, 8], strides = [1, 1, 1]} : vector<1x1x24xf32> to vector<1x1x8xf32>
    %89 = arith.addf %87, %88 : vector<1x1x8xf32>
    %90 = arith.negf %89 : vector<1x1x8xf32>
    %91 = math.exp %90 : vector<1x1x8xf32>
    %cst_33 = arith.constant 1.000000e+00 : f32
    %92 = vector.broadcast %cst_33 : f32 to vector<1x1x8xf32>
    %93 = arith.addf %92, %91 : vector<1x1x8xf32>
    %94 = arith.divf %92, %93 : vector<1x1x8xf32>
    %95 = vector.extract_strided_slice %78 {offsets = [0, 0, 16], sizes = [1, 1, 8], strides = [1, 1, 1]} : vector<1x1x24xf32> to vector<1x1x8xf32>
    %96 = vector.extract_strided_slice %77 {offsets = [0, 0, 16], sizes = [1, 1, 8], strides = [1, 1, 1]} : vector<1x1x24xf32> to vector<1x1x8xf32>
    %97 = arith.mulf %86, %96 : vector<1x1x8xf32>
    %98 = arith.addf %95, %97 : vector<1x1x8xf32>
    %99 = math.tanh %98 : vector<1x1x8xf32>
    %100 = arith.mulf %94, %73 : vector<1x1x8xf32>
    %cst_34 = arith.constant 1.000000e+00 : f32
    %101 = vector.broadcast %cst_34 : f32 to vector<1x1x8xf32>
    %102 = arith.subf %101, %94 : vector<1x1x8xf32>
    %103 = arith.mulf %102, %99 : vector<1x1x8xf32>
    %104 = arith.addf %100, %103 : vector<1x1x8xf32>
    %c0_35 = arith.constant 0 : index
    %c2 = arith.constant 2 : index
    %c0_36 = arith.constant 0 : index
    %105 = vector.load %arg8[%c0_35, %c2, %c0_36] : memref<1x8x8xf32, #tpu.memory_space<vmem>>, vector<1x1x8xf32>
    tpu.vector_store %arg8[%c0_35, %c2, %c0_36], %104 {strides = array<i32>} : memref<1x8x8xf32, #tpu.memory_space<vmem>>, vector<1x1x8xf32>,
    "tpu.trace_start"() <{level = 10 : i32, message = "bih,bhk->bik"}> : () -> ()
    %cst_37 = arith.constant dense<0.000000e+00> : vector<1x1x24xf32>
    %106 = tpu.matmul %104, %10, %cst_37 {dimension_numbers = #tpu.dot_dimension_numbers<[2], [1], [1], [2], [0, 0, 0, 1, 1, 2], [0], [0]>} : vector<1x1x8xf32>, vector<1x8x24xf32>, vector<1x1x24xf32> -> vector<1x1x24xf32>
    "tpu.trace_stop"() : () -> ()
    %107 = arith.addf %106, %11 : vector<1x1x24xf32>
    %108 = math.tanh %107 : vector<1x1x24xf32>
    %109 = vector.extract_strided_slice %9 {offsets = [0, 3, 0], sizes = [1, 1, 24], strides = [1, 1, 1]} : vector<1x8x24xf32> to vector<1x1x24xf32>
    %110 = vector.extract_strided_slice %109 {offsets = [0, 0, 0], sizes = [1, 1, 8], strides = [1, 1, 1]} : vector<1x1x24xf32> to vector<1x1x8xf32>
    %111 = vector.extract_strided_slice %108 {offsets = [0, 0, 0], sizes = [1, 1, 8], strides = [1, 1, 1]} : vector<1x1x24xf32> to vector<1x1x8xf32>
    %112 = arith.addf %110, %111 : vector<1x1x8xf32>
    %113 = arith.negf %112 : vector<1x1x8xf32>
    %114 = math.exp %113 : vector<1x1x8xf32>
    %cst_38 = arith.constant 1.000000e+00 : f32
    %115 = vector.broadcast %cst_38 : f32 to vector<1x1x8xf32>
    %116 = arith.addf %115, %114 : vector<1x1x8xf32>
    %117 = arith.divf %115, %116 : vector<1x1x8xf32>
    %118 = vector.extract_strided_slice %109 {offsets = [0, 0, 8], sizes = [1, 1, 8], strides = [1, 1, 1]} : vector<1x1x24xf32> to vector<1x1x8xf32>
    %119 = vector.extract_strided_slice %108 {offsets = [0, 0, 8], sizes = [1, 1, 8], strides = [1, 1, 1]} : vector<1x1x24xf32> to vector<1x1x8xf32>
    %120 = arith.addf %118, %119 : vector<1x1x8xf32>
    %121 = arith.negf %120 : vector<1x1x8xf32>
    %122 = math.exp %121 : vector<1x1x8xf32>
    %cst_39 = arith.constant 1.000000e+00 : f32
    %123 = vector.broadcast %cst_39 : f32 to vector<1x1x8xf32>
    %124 = arith.addf %123, %122 : vector<1x1x8xf32>
    %125 = arith.divf %123, %124 : vector<1x1x8xf32>
    %126 = vector.extract_strided_slice %109 {offsets = [0, 0, 16], sizes = [1, 1, 8], strides = [1, 1, 1]} : vector<1x1x24xf32> to vector<1x1x8xf32>
    %127 = vector.extract_strided_slice %108 {offsets = [0, 0, 16], sizes = [1, 1, 8], strides = [1, 1, 1]} : vector<1x1x24xf32> to vector<1x1x8xf32>
    %128 = arith.mulf %117, %127 : vector<1x1x8xf32>
    %129 = arith.addf %126, %128 : vector<1x1x8xf32>
    %130 = math.tanh %129 : vector<1x1x8xf32>
    %131 = arith.mulf %125, %104 : vector<1x1x8xf32>
    %cst_40 = arith.constant 1.000000e+00 : f32
    %132 = vector.broadcast %cst_40 : f32 to vector<1x1x8xf32>
    %133 = arith.subf %132, %125 : vector<1x1x8xf32>
    %134 = arith.mulf %133, %130 : vector<1x1x8xf32>
    %135 = arith.addf %131, %134 : vector<1x1x8xf32>
    %c0_41 = arith.constant 0 : index
    %c3 = arith.constant 3 : index
    %c0_42 = arith.constant 0 : index
    %136 = vector.load %arg8[%c0_41, %c3, %c0_42] : memref<1x8x8xf32, #tpu.memory_space<vmem>>, vector<1x1x8xf32>
    tpu.vector_store %arg8[%c0_41, %c3, %c0_42], %135 {strides = array<i32>} : memref<1x8x8xf32, #tpu.memory_space<vmem>>, vector<1x1x8xf32>,
    "tpu.trace_start"() <{level = 10 : i32, message = "bih,bhk->bik"}> : () -> ()
    %cst_43 = arith.constant dense<0.000000e+00> : vector<1x1x24xf32>
    %137 = tpu.matmul %135, %10, %cst_43 {dimension_numbers = #tpu.dot_dimension_numbers<[2], [1], [1], [2], [0, 0, 0, 1, 1, 2], [0], [0]>} : vector<1x1x8xf32>, vector<1x8x24xf32>, vector<1x1x24xf32> -> vector<1x1x24xf32>
    "tpu.trace_stop"() : () -> ()
    %138 = arith.addf %137, %11 : vector<1x1x24xf32>
    %139 = math.tanh %138 : vector<1x1x24xf32>
    %140 = vector.extract_strided_slice %9 {offsets = [0, 4, 0], sizes = [1, 1, 24], strides = [1, 1, 1]} : vector<1x8x24xf32> to vector<1x1x24xf32>
    %141 = vector.extract_strided_slice %140 {offsets = [0, 0, 0], sizes = [1, 1, 8], strides = [1, 1, 1]} : vector<1x1x24xf32> to vector<1x1x8xf32>
    %142 = vector.extract_strided_slice %139 {offsets = [0, 0, 0], sizes = [1, 1, 8], strides = [1, 1, 1]} : vector<1x1x24xf32> to vector<1x1x8xf32>
    %143 = arith.addf %141, %142 : vector<1x1x8xf32>
    %144 = arith.negf %143 : vector<1x1x8xf32>
    %145 = math.exp %144 : vector<1x1x8xf32>
    %cst_44 = arith.constant 1.000000e+00 : f32
    %146 = vector.broadcast %cst_44 : f32 to vector<1x1x8xf32>
    %147 = arith.addf %146, %145 : vector<1x1x8xf32>
    %148 = arith.divf %146, %147 : vector<1x1x8xf32>
    %149 = vector.extract_strided_slice %140 {offsets = [0, 0, 8], sizes = [1, 1, 8], strides = [1, 1, 1]} : vector<1x1x24xf32> to vector<1x1x8xf32>
    %150 = vector.extract_strided_slice %139 {offsets = [0, 0, 8], sizes = [1, 1, 8], strides = [1, 1, 1]} : vector<1x1x24xf32> to vector<1x1x8xf32>
    %151 = arith.addf %149, %150 : vector<1x1x8xf32>
    %152 = arith.negf %151 : vector<1x1x8xf32>
    %153 = math.exp %152 : vector<1x1x8xf32>
    %cst_45 = arith.constant 1.000000e+00 : f32
    %154 = vector.broadcast %cst_45 : f32 to vector<1x1x8xf32>
    %155 = arith.addf %154, %153 : vector<1x1x8xf32>
    %156 = arith.divf %154, %155 : vector<1x1x8xf32>
    %157 = vector.extract_strided_slice %140 {offsets = [0, 0, 16], sizes = [1, 1, 8], strides = [1, 1, 1]} : vector<1x1x24xf32> to vector<1x1x8xf32>
    %158 = vector.extract_strided_slice %139 {offsets = [0, 0, 16], sizes = [1, 1, 8], strides = [1, 1, 1]} : vector<1x1x24xf32> to vector<1x1x8xf32>
    %159 = arith.mulf %148, %158 : vector<1x1x8xf32>
    %160 = arith.addf %157, %159 : vector<1x1x8xf32>
    %161 = math.tanh %160 : vector<1x1x8xf32>
    %162 = arith.mulf %156, %135 : vector<1x1x8xf32>
    %cst_46 = arith.constant 1.000000e+00 : f32
    %163 = vector.broadcast %cst_46 : f32 to vector<1x1x8xf32>
    %164 = arith.subf %163, %156 : vector<1x1x8xf32>
    %165 = arith.mulf %164, %161 : vector<1x1x8xf32>
    %166 = arith.addf %162, %165 : vector<1x1x8xf32>
    %c0_47 = arith.constant 0 : index
    %c4 = arith.constant 4 : index
    %c0_48 = arith.constant 0 : index
    %167 = vector.load %arg8[%c0_47, %c4, %c0_48] : memref<1x8x8xf32, #tpu.memory_space<vmem>>, vector<1x1x8xf32>
    tpu.vector_store %arg8[%c0_47, %c4, %c0_48], %166 {strides = array<i32>} : memref<1x8x8xf32, #tpu.memory_space<vmem>>, vector<1x1x8xf32>,
    "tpu.trace_start"() <{level = 10 : i32, message = "bih,bhk->bik"}> : () -> ()
    %cst_49 = arith.constant dense<0.000000e+00> : vector<1x1x24xf32>
    %168 = tpu.matmul %166, %10, %cst_49 {dimension_numbers = #tpu.dot_dimension_numbers<[2], [1], [1], [2], [0, 0, 0, 1, 1, 2], [0], [0]>} : vector<1x1x8xf32>, vector<1x8x24xf32>, vector<1x1x24xf32> -> vector<1x1x24xf32>
    "tpu.trace_stop"() : () -> ()
    %169 = arith.addf %168, %11 : vector<1x1x24xf32>
    %170 = math.tanh %169 : vector<1x1x24xf32>
    %171 = vector.extract_strided_slice %9 {offsets = [0, 5, 0], sizes = [1, 1, 24], strides = [1, 1, 1]} : vector<1x8x24xf32> to vector<1x1x24xf32>
    %172 = vector.extract_strided_slice %171 {offsets = [0, 0, 0], sizes = [1, 1, 8], strides = [1, 1, 1]} : vector<1x1x24xf32> to vector<1x1x8xf32>
    %173 = vector.extract_strided_slice %170 {offsets = [0, 0, 0], sizes = [1, 1, 8], strides = [1, 1, 1]} : vector<1x1x24xf32> to vector<1x1x8xf32>
    %174 = arith.addf %172, %173 : vector<1x1x8xf32>
    %175 = arith.negf %174 : vector<1x1x8xf32>
    %176 = math.exp %175 : vector<1x1x8xf32>
    %cst_50 = arith.constant 1.000000e+00 : f32
    %177 = vector.broadcast %cst_50 : f32 to vector<1x1x8xf32>
    %178 = arith.addf %177, %176 : vector<1x1x8xf32>
    %179 = arith.divf %177, %178 : vector<1x1x8xf32>
    %180 = vector.extract_strided_slice %171 {offsets = [0, 0, 8], sizes = [1, 1, 8], strides = [1, 1, 1]} : vector<1x1x24xf32> to vector<1x1x8xf32>
    %181 = vector.extract_strided_slice %170 {offsets = [0, 0, 8], sizes = [1, 1, 8], strides = [1, 1, 1]} : vector<1x1x24xf32> to vector<1x1x8xf32>
    %182 = arith.addf %180, %181 : vector<1x1x8xf32>
    %183 = arith.negf %182 : vector<1x1x8xf32>
    %184 = math.exp %183 : vector<1x1x8xf32>
    %cst_51 = arith.constant 1.000000e+00 : f32
    %185 = vector.broadcast %cst_51 : f32 to vector<1x1x8xf32>
    %186 = arith.addf %185, %184 : vector<1x1x8xf32>
    %187 = arith.divf %185, %186 : vector<1x1x8xf32>
    %188 = vector.extract_strided_slice %171 {offsets = [0, 0, 16], sizes = [1, 1, 8], strides = [1, 1, 1]} : vector<1x1x24xf32> to vector<1x1x8xf32>
    %189 = vector.extract_strided_slice %170 {offsets = [0, 0, 16], sizes = [1, 1, 8], strides = [1, 1, 1]} : vector<1x1x24xf32> to vector<1x1x8xf32>
    %190 = arith.mulf %179, %189 : vector<1x1x8xf32>
    %191 = arith.addf %188, %190 : vector<1x1x8xf32>
    %192 = math.tanh %191 : vector<1x1x8xf32>
    %193 = arith.mulf %187, %166 : vector<1x1x8xf32>
    %cst_52 = arith.constant 1.000000e+00 : f32
    %194 = vector.broadcast %cst_52 : f32 to vector<1x1x8xf32>
    %195 = arith.subf %194, %187 : vector<1x1x8xf32>
    %196 = arith.mulf %195, %192 : vector<1x1x8xf32>
    %197 = arith.addf %193, %196 : vector<1x1x8xf32>
    %c0_53 = arith.constant 0 : index
    %c5 = arith.constant 5 : index
    %c0_54 = arith.constant 0 : index
    %198 = vector.load %arg8[%c0_53, %c5, %c0_54] : memref<1x8x8xf32, #tpu.memory_space<vmem>>, vector<1x1x8xf32>
    tpu.vector_store %arg8[%c0_53, %c5, %c0_54], %197 {strides = array<i32>} : memref<1x8x8xf32, #tpu.memory_space<vmem>>, vector<1x1x8xf32>,
    "tpu.trace_start"() <{level = 10 : i32, message = "bih,bhk->bik"}> : () -> ()
    %cst_55 = arith.constant dense<0.000000e+00> : vector<1x1x24xf32>
    %199 = tpu.matmul %197, %10, %cst_55 {dimension_numbers = #tpu.dot_dimension_numbers<[2], [1], [1], [2], [0, 0, 0, 1, 1, 2], [0], [0]>} : vector<1x1x8xf32>, vector<1x8x24xf32>, vector<1x1x24xf32> -> vector<1x1x24xf32>
    "tpu.trace_stop"() : () -> ()
    %200 = arith.addf %199, %11 : vector<1x1x24xf32>
    %201 = math.tanh %200 : vector<1x1x24xf32>
    %202 = vector.extract_strided_slice %9 {offsets = [0, 6, 0], sizes = [1, 1, 24], strides = [1, 1, 1]} : vector<1x8x24xf32> to vector<1x1x24xf32>
    %203 = vector.extract_strided_slice %202 {offsets = [0, 0, 0], sizes = [1, 1, 8], strides = [1, 1, 1]} : vector<1x1x24xf32> to vector<1x1x8xf32>
    %204 = vector.extract_strided_slice %201 {offsets = [0, 0, 0], sizes = [1, 1, 8], strides = [1, 1, 1]} : vector<1x1x24xf32> to vector<1x1x8xf32>
    %205 = arith.addf %203, %204 : vector<1x1x8xf32>
    %206 = arith.negf %205 : vector<1x1x8xf32>
    %207 = math.exp %206 : vector<1x1x8xf32>
    %cst_56 = arith.constant 1.000000e+00 : f32
    %208 = vector.broadcast %cst_56 : f32 to vector<1x1x8xf32>
    %209 = arith.addf %208, %207 : vector<1x1x8xf32>
    %210 = arith.divf %208, %209 : vector<1x1x8xf32>
    %211 = vector.extract_strided_slice %202 {offsets = [0, 0, 8], sizes = [1, 1, 8], strides = [1, 1, 1]} : vector<1x1x24xf32> to vector<1x1x8xf32>
    %212 = vector.extract_strided_slice %201 {offsets = [0, 0, 8], sizes = [1, 1, 8], strides = [1, 1, 1]} : vector<1x1x24xf32> to vector<1x1x8xf32>
    %213 = arith.addf %211, %212 : vector<1x1x8xf32>
    %214 = arith.negf %213 : vector<1x1x8xf32>
    %215 = math.exp %214 : vector<1x1x8xf32>
    %cst_57 = arith.constant 1.000000e+00 : f32
    %216 = vector.broadcast %cst_57 : f32 to vector<1x1x8xf32>
    %217 = arith.addf %216, %215 : vector<1x1x8xf32>
    %218 = arith.divf %216, %217 : vector<1x1x8xf32>
    %219 = vector.extract_strided_slice %202 {offsets = [0, 0, 16], sizes = [1, 1, 8], strides = [1, 1, 1]} : vector<1x1x24xf32> to vector<1x1x8xf32>
    %220 = vector.extract_strided_slice %201 {offsets = [0, 0, 16], sizes = [1, 1, 8], strides = [1, 1, 1]} : vector<1x1x24xf32> to vector<1x1x8xf32>
    %221 = arith.mulf %210, %220 : vector<1x1x8xf32>
    %222 = arith.addf %219, %221 : vector<1x1x8xf32>
    %223 = math.tanh %222 : vector<1x1x8xf32>
    %224 = arith.mulf %218, %197 : vector<1x1x8xf32>
    %cst_58 = arith.constant 1.000000e+00 : f32
    %225 = vector.broadcast %cst_58 : f32 to vector<1x1x8xf32>
    %226 = arith.subf %225, %218 : vector<1x1x8xf32>
    %227 = arith.mulf %226, %223 : vector<1x1x8xf32>
    %228 = arith.addf %224, %227 : vector<1x1x8xf32>
    %c0_59 = arith.constant 0 : index
    %c6 = arith.constant 6 : index
    %c0_60 = arith.constant 0 : index
    %229 = vector.load %arg8[%c0_59, %c6, %c0_60] : memref<1x8x8xf32, #tpu.memory_space<vmem>>, vector<1x1x8xf32>
    tpu.vector_store %arg8[%c0_59, %c6, %c0_60], %228 {strides = array<i32>} : memref<1x8x8xf32, #tpu.memory_space<vmem>>, vector<1x1x8xf32>,
    "tpu.trace_start"() <{level = 10 : i32, message = "bih,bhk->bik"}> : () -> ()
    %cst_61 = arith.constant dense<0.000000e+00> : vector<1x1x24xf32>
    %230 = tpu.matmul %228, %10, %cst_61 {dimension_numbers = #tpu.dot_dimension_numbers<[2], [1], [1], [2], [0, 0, 0, 1, 1, 2], [0], [0]>} : vector<1x1x8xf32>, vector<1x8x24xf32>, vector<1x1x24xf32> -> vector<1x1x24xf32>
    "tpu.trace_stop"() : () -> ()
    %231 = arith.addf %230, %11 : vector<1x1x24xf32>
    %232 = math.tanh %231 : vector<1x1x24xf32>
    %233 = vector.extract_strided_slice %9 {offsets = [0, 7, 0], sizes = [1, 1, 24], strides = [1, 1, 1]} : vector<1x8x24xf32> to vector<1x1x24xf32>
    %234 = vector.extract_strided_slice %233 {offsets = [0, 0, 0], sizes = [1, 1, 8], strides = [1, 1, 1]} : vector<1x1x24xf32> to vector<1x1x8xf32>
    %235 = vector.extract_strided_slice %232 {offsets = [0, 0, 0], sizes = [1, 1, 8], strides = [1, 1, 1]} : vector<1x1x24xf32> to vector<1x1x8xf32>
    %236 = arith.addf %234, %235 : vector<1x1x8xf32>
    %237 = arith.negf %236 : vector<1x1x8xf32>
    %238 = math.exp %237 : vector<1x1x8xf32>
    %cst_62 = arith.constant 1.000000e+00 : f32
    %239 = vector.broadcast %cst_62 : f32 to vector<1x1x8xf32>
    %240 = arith.addf %239, %238 : vector<1x1x8xf32>
    %241 = arith.divf %239, %240 : vector<1x1x8xf32>
    %242 = vector.extract_strided_slice %233 {offsets = [0, 0, 8], sizes = [1, 1, 8], strides = [1, 1, 1]} : vector<1x1x24xf32> to vector<1x1x8xf32>
    %243 = vector.extract_strided_slice %232 {offsets = [0, 0, 8], sizes = [1, 1, 8], strides = [1, 1, 1]} : vector<1x1x24xf32> to vector<1x1x8xf32>
    %244 = arith.addf %242, %243 : vector<1x1x8xf32>
    %245 = arith.negf %244 : vector<1x1x8xf32>
    %246 = math.exp %245 : vector<1x1x8xf32>
    %cst_63 = arith.constant 1.000000e+00 : f32
    %247 = vector.broadcast %cst_63 : f32 to vector<1x1x8xf32>
    %248 = arith.addf %247, %246 : vector<1x1x8xf32>
    %249 = arith.divf %247, %248 : vector<1x1x8xf32>
    %250 = vector.extract_strided_slice %233 {offsets = [0, 0, 16], sizes = [1, 1, 8], strides = [1, 1, 1]} : vector<1x1x24xf32> to vector<1x1x8xf32>
    %251 = vector.extract_strided_slice %232 {offsets = [0, 0, 16], sizes = [1, 1, 8], strides = [1, 1, 1]} : vector<1x1x24xf32> to vector<1x1x8xf32>
    %252 = arith.mulf %241, %251 : vector<1x1x8xf32>
    %253 = arith.addf %250, %252 : vector<1x1x8xf32>
    %254 = math.tanh %253 : vector<1x1x8xf32>
    %255 = arith.mulf %249, %228 : vector<1x1x8xf32>
    %cst_64 = arith.constant 1.000000e+00 : f32
    %256 = vector.broadcast %cst_64 : f32 to vector<1x1x8xf32>
    %257 = arith.subf %256, %249 : vector<1x1x8xf32>
    %258 = arith.mulf %257, %254 : vector<1x1x8xf32>
    %259 = arith.addf %255, %258 : vector<1x1x8xf32>
    %c0_65 = arith.constant 0 : index
    %c7 = arith.constant 7 : index
    %c0_66 = arith.constant 0 : index
    %260 = vector.load %arg8[%c0_65, %c7, %c0_66] : memref<1x8x8xf32, #tpu.memory_space<vmem>>, vector<1x1x8xf32>
    tpu.vector_store %arg8[%c0_65, %c7, %c0_66], %259 {strides = array<i32>} : memref<1x8x8xf32, #tpu.memory_space<vmem>>, vector<1x1x8xf32>,
    %c0_67 = arith.constant 0 : index
    %c0_68 = arith.constant 0 : index
    %c0_69 = arith.constant 0 : index
    %261 = vector.load %arg9[%c0_67, %c0_68, %c0_69] : memref<1x1x8xf32, #tpu.memory_space<vmem>>, vector<1x1x8xf32>
    tpu.vector_store %arg9[%c0_67, %c0_68, %c0_69], %259 {strides = array<i32>} : memref<1x1x8xf32, #tpu.memory_space<vmem>>, vector<1x1x8xf32>,
    return
  }
  func.func @transform_0(%arg0: i32, %arg1: i32) -> (i32, i32, i32) {
    %c0_i32 = arith.constant 0 : i32
    %c0_i32_0 = arith.constant 0 : i32
    return %arg0, %arg1, %c0_i32 : i32, i32, i32
  }
  func.func @transform_1(%arg0: i32, %arg1: i32) -> (i32, i32, i32) {
    %c0_i32 = arith.constant 0 : i32
    %c0_i32_0 = arith.constant 0 : i32
    %c0_i32_1 = arith.constant 0 : i32
    return %arg0, %c0_i32, %c0_i32_0 : i32, i32, i32
  }
  func.func @transform_2(%arg0: i32, %arg1: i32) -> (i32, i32, i32) {
    %c0_i32 = arith.constant 0 : i32
    %c0_i32_0 = arith.constant 0 : i32
    %c0_i32_1 = arith.constant 0 : i32
    return %arg0, %c0_i32, %c0_i32_0 : i32, i32, i32
  }
  func.func @transform_3(%arg0: i32, %arg1: i32) -> (i32, i32, i32) {
    %c0_i32 = arith.constant 0 : i32
    %c0_i32_0 = arith.constant 0 : i32
    %c0_i32_1 = arith.constant 0 : i32
    return %arg0, %c0_i32, %c0_i32_0 : i32, i32, i32
  }
  func.func @transform_4(%arg0: i32, %arg1: i32) -> (i32, i32, i32) {
    %c0_i32 = arith.constant 0 : i32
    %c0_i32_0 = arith.constant 0 : i32
    %c0_i32_1 = arith.constant 0 : i32
    return %arg0, %c0_i32, %c0_i32_0 : i32, i32, i32
  }
  func.func @transform_5(%arg0: i32, %arg1: i32) -> (i32, i32, i32) {
    %c0_i32 = arith.constant 0 : i32
    %c0_i32_0 = arith.constant 0 : i32
    %c0_i32_1 = arith.constant 0 : i32
    return %arg0, %c0_i32, %c0_i32_0 : i32, i32, i32
  }
  func.func @transform_6(%arg0: i32, %arg1: i32) -> (i32, i32, i32) {
    %c0_i32 = arith.constant 0 : i32
    %c0_i32_0 = arith.constant 0 : i32
    return %arg0, %arg1, %c0_i32 : i32, i32, i32
  }
}

</mosaic_0001>

<llo_original>
// kernel: tpu_custom_call.1
$region0: #{tpu_custom_call.1}
  #allocation0 [shape = 'u32[]', space=smem, size = 0x4, offset = 0x4, fixed_abs, tag = 'smem constant byte address 0x4 - core index']
  #allocation1 [shape = 'u32[144,128]{1,0:T(1,128)}', space=vmem, size = 0x12000, scoped, tag = 'internal scratch']
  #allocation2 [shape = 'f32[1,1,8]{2,1,0:T(1,128)}', space=vmem, size = 0x200, scoped, tag = 'scratch operand']
  %s0 = inlined_call_operand.vmem [shape: f32[2,8,4], index: 0, kind: input, shape index: {}]
  %s1 = inlined_call_operand.vmem [shape: f32[2,1,8], index: 1, kind: input, shape index: {}]
  %s2 = inlined_call_operand.vmem [shape: f32[2,4,24], index: 2, kind: input, shape index: {}]
  %s3 = inlined_call_operand.vmem [shape: f32[2,8,24], index: 3, kind: input, shape index: {}]
  %s4 = inlined_call_operand.vmem [shape: f32[2,1,24], index: 4, kind: input, shape index: {}]
  %s5 = inlined_call_operand.vmem [shape: f32[2,1,24], index: 5, kind: input, shape index: {}]
  %s6 = inlined_call_operand.hbm [shape: f32[2,8,8], index: 6, kind: output, shape index: {}]
  %s7 = sld [smem:[#allocation0]]
  $region61: #{tpu_custom_call.1} parent=0
    _
  %s9 = ssub.s32 1, %s7
  %s10 = scalar_select 0, %s9, %s7
  $region1: #{tpu_custom_call.1} parent=0
    #allocation3 [shape = 'u8[8192]{0}', space=vmem, size = 0x2000, scoped, tag = 'output window, operand 0']
    #allocation4 [shape = 's32[2]{0}', space=sflag, size = 0x8, scoped, tag = 'scoped memory for tpu_custom_call.1']
    %11 = vsyncpa [#allocation4], 0
    %s12 = scalar_lea.sflag [#allocation4], 1
    %13 = vsyncpa %s12, 0
    loop: start=0, step=1, limit=4
    $region2: #{tpu_custom_call.1} parent=1 // loop_pre_header
      _
    $region3: #{tpu_custom_call.1} parent=1 // loop_header
      %s15 = sphi 0, %s19
      %p16 = scmp.ge.s32.totalorder %s15, 4
      %s22 = sphi 0, %s34
      %s23 = sphi 0, %s30
      %s24 = sphi 0, %s22
      %s25 = sphi 0, %s23
      %s26 = sphi 0, %s24
      %s27 = sphi 0, %s25
      %s39 = sphi 0, %s41
      %s42 = sphi 0, %s39
      %s43 = sphi 0, %s42
      %s59 = sphi 0, %s43
      %s65 = sphi 0, %s67
      %s68 = sphi 0, %s65
      %s69 = sphi 0, %s68
      %s85 = sphi 0, %s69
      %s91 = sphi 0, %s93
      %s94 = sphi 0, %s91
      %s95 = sphi 0, %s94
      %s111 = sphi 0, %s95
      %s117 = sphi 0, %s119
      %s120 = sphi 0, %s117
      %s121 = sphi 0, %s120
      %s137 = sphi 0, %s121
      %s143 = sphi 0, %s145
      %s146 = sphi 0, %s143
      %s147 = sphi 0, %s146
      %s163 = sphi 0, %s147
      %s169 = sphi 0, %s171
      %s172 = sphi 0, %s169
      %s173 = sphi 0, %s172
      %s189 = sphi 0, %s173
      %s197 = sphi 0, %s199
      %s200 = sphi 0, %s197
      %s201 = sphi 0, %s200
      %s217 = sphi 0, %s201
    $region4: #{tpu_custom_call.1} parent=1 // loop_header_branch
      %18 = sbr.rel (%p16) target = $region8
    $region5: #{tpu_custom_call.1} parent=1 // loop_body
      %s20 = ssub.s32 %s15, 1
      %s21 = ssub.s32 %s15, 2
      %s28 = sadd.s32 1, %s23
      %p29 = scmp.ge.s32.totalorder %s28, 1
      %s30 = scalar_select %p29, 0, %s28
      %s31 = sadd.s32 1, %s22
      %s32 = scalar_select %p29, %s31, %s22
      %p33 = scmp.ge.s32.totalorder %s32, 2
      %s34 = scalar_select %p33, 0, %s32
      %s35 = ssub.s32 %s22, %s34
      %s36 = ssub.s32 %s23, %s30
      %s37 = sor.u32 %s35, %s36
      %p38 = scmp.eq.s32.totalorder %s37, 0
      %s40 = sadd.s32 %s39, 1
      %s41 = scalar_select %p38, %s39, %s40
      %p44 = pneg %p38
      %p45 = scmp.eq.s32.totalorder %s15, 1
      %p46 = por %p44, %p45
      %p47 = scmp.ne.s32.totalorder %s39, %s42
      %p48 = scmp.eq.s32.totalorder %s15, 0
      %p49 = por %p47, %p48
      %p50 = scmp.ne.s32.totalorder %s39, %s42
      %p51 = scmp.eq.s32.totalorder %s20, 1
      %p52 = por %p50, %p51
      %p53 = scmp.ne.s32.totalorder %s42, %s43
      %p54 = scmp.eq.s32.totalorder %s20, 0
      %p55 = por %p53, %p54
      %p56 = scmp.ne.s32.totalorder %s42, %s43
      %p57 = scmp.eq.s32.totalorder %s21, 1
      %p58 = por %p56, %p57
      %p60 = scmp.ne.s32.totalorder %s43, %s59
      %p61 = scmp.eq.s32.totalorder %s21, 0
      %p62 = por %p60, %p61
      %s63 = ssub.s32 %s22, %s34
      %p64 = scmp.eq.s32.totalorder %s63, 0
      %s66 = sadd.s32 %s65, 1
      %s67 = scalar_select %p64, %s65, %s66
      %p70 = pneg %p64
      %p71 = scmp.eq.s32.totalorder %s15, 1
      %p72 = por %p70, %p71
      %p73 = scmp.ne.s32.totalorder %s65, %s68
      %p74 = scmp.eq.s32.totalorder %s15, 0
      %p75 = por %p73, %p74
      %p76 = scmp.ne.s32.totalorder %s65, %s68
      %p77 = scmp.eq.s32.totalorder %s20, 1
      %p78 = por %p76, %p77
      %p79 = scmp.ne.s32.totalorder %s68, %s69
      %p80 = scmp.eq.s32.totalorder %s20, 0
      %p81 = por %p79, %p80
      %p82 = scmp.ne.s32.totalorder %s68, %s69
      %p83 = scmp.eq.s32.totalorder %s21, 1
      %p84 = por %p82, %p83
      %p86 = scmp.ne.s32.totalorder %s69, %s85
      %p87 = scmp.eq.s32.totalorder %s21, 0
      %p88 = por %p86, %p87
      %s89 = ssub.s32 %s22, %s34
      %p90 = scmp.eq.s32.totalorder %s89, 0
      %s92 = sadd.s32 %s91, 1
      %s93 = scalar_select %p90, %s91, %s92
      %p96 = pneg %p90
      %p97 = scmp.eq.s32.totalorder %s15, 1
      %p98 = por %p96, %p97
      %p99 = scmp.ne.s32.totalorder %s91, %s94
      %p100 = scmp.eq.s32.totalorder %s15, 0
      %p101 = por %p99, %p100
      %p102 = scmp.ne.s32.totalorder %s91, %s94
      %p103 = scmp.eq.s32.totalorder %s20, 1
      %p104 = por %p102, %p103
      %p105 = scmp.ne.s32.totalorder %s94, %s95
      %p106 = scmp.eq.s32.totalorder %s20, 0
      %p107 = por %p105, %p106
      %p108 = scmp.ne.s32.totalorder %s94, %s95
      %p109 = scmp.eq.s32.totalorder %s21, 1
      %p110 = por %p108, %p109
      %p112 = scmp.ne.s32.totalorder %s95, %s111
      %p113 = scmp.eq.s32.totalorder %s21, 0
      %p114 = por %p112, %p113
      %s115 = ssub.s32 %s22, %s34
      %p116 = scmp.eq.s32.totalorder %s115, 0
      %s118 = sadd.s32 %s117, 1
      %s119 = scalar_select %p116, %s117, %s118
      %p122 = pneg %p116
      %p123 = scmp.eq.s32.totalorder %s15, 1
      %p124 = por %p122, %p123
      %p125 = scmp.ne.s32.totalorder %s117, %s120
      %p126 = scmp.eq.s32.totalorder %s15, 0
      %p127 = por %p125, %p126
      %p128 = scmp.ne.s32.totalorder %s117, %s120
      %p129 = scmp.eq.s32.totalorder %s20, 1
      %p130 = por %p128, %p129
      %p131 = scmp.ne.s32.totalorder %s120, %s121
      %p132 = scmp.eq.s32.totalorder %s20, 0
      %p133 = por %p131, %p132
      %p134 = scmp.ne.s32.totalorder %s120, %s121
      %p135 = scmp.eq.s32.totalorder %s21, 1
      %p136 = por %p134, %p135
      %p138 = scmp.ne.s32.totalorder %s121, %s137
      %p139 = scmp.eq.s32.totalorder %s21, 0
      %p140 = por %p138, %p139
      %s141 = ssub.s32 %s22, %s34
      %p142 = scmp.eq.s32.totalorder %s141, 0
      %s144 = sadd.s32 %s143, 1
      %s145 = scalar_select %p142, %s143, %s144
      %p148 = pneg %p142
      %p149 = scmp.eq.s32.totalorder %s15, 1
      %p150 = por %p148, %p149
      %p151 = scmp.ne.s32.totalorder %s143, %s146
      %p152 = scmp.eq.s32.totalorder %s15, 0
      %p153 = por %p151, %p152
      %p154 = scmp.ne.s32.totalorder %s143, %s146
      %p155 = scmp.eq.s32.totalorder %s20, 1
      %p156 = por %p154, %p155
      %p157 = scmp.ne.s32.totalorder %s146, %s147
      %p158 = scmp.eq.s32.totalorder %s20, 0
      %p159 = por %p157, %p158
      %p160 = scmp.ne.s32.totalorder %s146, %s147
      %p161 = scmp.eq.s32.totalorder %s21, 1
      %p162 = por %p160, %p161
      %p164 = scmp.ne.s32.totalorder %s147, %s163
      %p165 = scmp.eq.s32.totalorder %s21, 0
      %p166 = por %p164, %p165
      %s167 = ssub.s32 %s22, %s34
      %p168 = scmp.eq.s32.totalorder %s167, 0
      %s170 = sadd.s32 %s169, 1
      %s171 = scalar_select %p168, %s169, %s170
      %p174 = pneg %p168
      %p175 = scmp.eq.s32.totalorder %s15, 1
      %p176 = por %p174, %p175
      %p177 = scmp.ne.s32.totalorder %s169, %s172
      %p178 = scmp.eq.s32.totalorder %s15, 0
      %p179 = por %p177, %p178
      %p180 = scmp.ne.s32.totalorder %s169, %s172
      %p181 = scmp.eq.s32.totalorder %s20, 1
      %p182 = por %p180, %p181
      %p183 = scmp.ne.s32.totalorder %s172, %s173
      %p184 = scmp.eq.s32.totalorder %s20, 0
      %p185 = por %p183, %p184
      %p186 = scmp.ne.s32.totalorder %s172, %s173
      %p187 = scmp.eq.s32.totalorder %s21, 1
      %p188 = por %p186, %p187
      %p190 = scmp.ne.s32.totalorder %s173, %s189
      %p191 = scmp.eq.s32.totalorder %s21, 0
      %p192 = por %p190, %p191
      %s193 = ssub.s32 %s22, %s34
      %s194 = ssub.s32 %s23, %s30
      %s195 = sor.u32 %s193, %s194
      %p196 = scmp.eq.s32.totalorder %s195, 0
      %s198 = sadd.s32 %s197, 1
      %s199 = scalar_select %p196, %s197, %s198
      %p202 = pneg %p196
      %p203 = scmp.eq.s32.totalorder %s15, 1
      %p204 = por %p202, %p203
      %p205 = scmp.ne.s32.totalorder %s197, %s200
      %p206 = scmp.eq.s32.totalorder %s15, 0
      %p207 = por %p205, %p206
      %p208 = scmp.ne.s32.totalorder %s197, %s200
      %p209 = scmp.eq.s32.totalorder %s20, 1
      %p210 = por %p208, %p209
      %p211 = scmp.ne.s32.totalorder %s200, %s201
      %p212 = scmp.eq.s32.totalorder %s20, 0
      %p213 = por %p211, %p212
      %p214 = scmp.ne.s32.totalorder %s200, %s201
      %p215 = scmp.eq.s32.totalorder %s21, 1
      %p216 = por %p214, %p215
      %p218 = scmp.ne.s32.totalorder %s201, %s217
      %p219 = scmp.eq.s32.totalorder %s21, 0
      %p220 = por %p218, %p219
      %p221 = scmp.le.s32.totalorder 1, %s15
      %p222 = scmp.lt.s32.totalorder %s15, 3
      %p223 = pnand %p221, %p222
      %p224 = pneg %p223
      // Predicated region
      $region9: #{tpu_custom_call.1} parent=5 // pred_check
        _
      $region10: #{tpu_custom_call.1} parent=5 // pred_check_branch
        %226 = sbr.rel (%p223) target = $region12
      $region11: #{tpu_custom_call.1} parent=5 // pred_region
        %s227 = ssub.s32 %s15, 1
      $region12: #{tpu_custom_call.1} parent=5 // pred_fallthru
        _
      %p228 = scmp.lt.s32.totalorder %s15, 2
      // Predicated region
      $region13: #{tpu_custom_call.1} parent=5 // pred_check
        %p229 = pneg %p228
      $region14: #{tpu_custom_call.1} parent=5 // pred_check_branch
        %231 = sbr.rel (%p229) target = $region16
      $region15: #{tpu_custom_call.1} parent=5 // pred_region
        // Predicated region
        $region17: #{tpu_custom_call.1} parent=15 // pred_check
          %p232 = pneg %p49
        $region18: #{tpu_custom_call.1} parent=15 // pred_check_branch
          %234 = sbr.rel (%p232) target = $region20
        $region19: #{tpu_custom_call.1} parent=15 // pred_region
          %p235 = scmp.lt.s32.totalorder %s22, 1
          %s236 = scalar_select %p235, %s22, 1
          %p237 = scmp.lt.s32.totalorder %s23, 0
          %s238 = scalar_select %p237, %s23, 0
          %s239 = sadd.s32 %s238, %s236
          %s240 = smul.addr %s239, 8
          %s241 = scalar_lea.vmem %s0, %s240
        $region20: #{tpu_custom_call.1} parent=15 // pred_fallthru
          _
        // Predicated region
        $region21: #{tpu_custom_call.1} parent=15 // pred_check
          %p242 = pneg %p75
        $region22: #{tpu_custom_call.1} parent=15 // pred_check_branch
          %244 = sbr.rel (%p242) target = $region24
        $region23: #{tpu_custom_call.1} parent=15 // pred_region
          %p245 = scmp.lt.s32.totalorder %s22, 1
          %s246 = scalar_select %p245, %s22, 1
          %s247 = scalar_lea.vmem %s1, %s246
        $region24: #{tpu_custom_call.1} parent=15 // pred_fallthru
          _
        // Predicated region
        $region25: #{tpu_custom_call.1} parent=15 // pred_check
          %p248 = pneg %p101
        $region26: #{tpu_custom_call.1} parent=15 // pred_check_branch
          %250 = sbr.rel (%p248) target = $region28
        $region27: #{tpu_custom_call.1} parent=15 // pred_region
          %p251 = scmp.lt.s32.totalorder %s22, 1
          %s252 = scalar_select %p251, %s22, 1
          %s253 = smul.addr %s252, 4
          %s254 = scalar_lea.vmem %s2, %s253
        $region28: #{tpu_custom_call.1} parent=15 // pred_fallthru
          _
        // Predicated region
        $region29: #{tpu_custom_call.1} parent=15 // pred_check
          %p255 = pneg %p127
        $region30: #{tpu_custom_call.1} parent=15 // pred_check_branch
          %257 = sbr.rel (%p255) target = $region32
        $region31: #{tpu_custom_call.1} parent=15 // pred_region
          %p258 = scmp.lt.s32.totalorder %s22, 1
          %s259 = scalar_select %p258, %s22, 1
          %s260 = smul.addr %s259, 8
          %s261 = scalar_lea.vmem %s3, %s260
        $region32: #{tpu_custom_call.1} parent=15 // pred_fallthru
          _
        // Predicated region
        $region33: #{tpu_custom_call.1} parent=15 // pred_check
          %p262 = pneg %p153
        $region34: #{tpu_custom_call.1} parent=15 // pred_check_branch
          %264 = sbr.rel (%p262) target = $region36
        $region35: #{tpu_custom_call.1} parent=15 // pred_region
          %p265 = scmp.lt.s32.totalorder %s22, 1
          %s266 = scalar_select %p265, %s22, 1
          %s267 = scalar_lea.vmem %s4, %s266
        $region36: #{tpu_custom_call.1} parent=15 // pred_fallthru
          _
        // Predicated region
        $region37: #{tpu_custom_call.1} parent=15 // pred_check
          %p268 = pneg %p179
        $region38: #{tpu_custom_call.1} parent=15 // pred_check_branch
          %270 = sbr.rel (%p268) target = $region40
        $region39: #{tpu_custom_call.1} parent=15 // pred_region
          %p271 = scmp.lt.s32.totalorder %s22, 1
          %s272 = scalar_select %p271, %s22, 1
          %s273 = scalar_lea.vmem %s5, %s272
        $region40: #{tpu_custom_call.1} parent=15 // pred_fallthru
          _
      $region16: #{tpu_custom_call.1} parent=5 // pred_fallthru
        _
      %p274 = scmp.le.s32.totalorder 1, %s15
      %p275 = scmp.lt.s32.totalorder %s15, 3
      %p276 = pnand %p274, %p275
      %p277 = pneg %p276
      // Predicated region
      $region41: #{tpu_custom_call.1} parent=5 // pred_check
        _
      $region42: #{tpu_custom_call.1} parent=5 // pred_check_branch
        %279 = sbr.rel (%p276) target = $region44
      $region43: #{tpu_custom_call.1} parent=5 // pred_region
        %s280 = ssub.s32 %s15, 1
        %p281 = scmp.lt.s32.totalorder %s24, 1
        %s282 = scalar_select %p281, %s24, 1
        %p283 = scmp.lt.s32.totalorder %s25, 0
        %s284 = scalar_select %p283, %s25, 0
        %s285 = sadd.s32 %s284, %s282
        %s286 = smul.addr %s285, 8
        %s287 = scalar_lea.vmem %s0, %s286
        %p288 = pneg %p55
        %p289 = pneg %p52
        %p290 = scmp.lt.s32.totalorder %s24, 1
        %s291 = scalar_select %p290, %s24, 1
        %s292 = scalar_lea.vmem %s1, %s291
        %p293 = pneg %p81
        %p294 = pneg %p78
        %p295 = scmp.lt.s32.totalorder %s24, 1
        %s296 = scalar_select %p295, %s24, 1
        %s297 = smul.addr %s296, 4
        %s298 = scalar_lea.vmem %s2, %s297
        %p299 = pneg %p107
        %p300 = pneg %p104
        %p301 = scmp.lt.s32.totalorder %s24, 1
        %s302 = scalar_select %p301, %s24, 1
        %s303 = smul.addr %s302, 8
        %s304 = scalar_lea.vmem %s3, %s303
        %p305 = pneg %p133
        %p306 = pneg %p130
        %p307 = scmp.lt.s32.totalorder %s24, 1
        %s308 = scalar_select %p307, %s24, 1
        %s309 = scalar_lea.vmem %s4, %s308
        %p310 = pneg %p159
        %p311 = pneg %p156
        %p312 = scmp.lt.s32.totalorder %s24, 1
        %s313 = scalar_select %p312, %s24, 1
        %s314 = scalar_lea.vmem %s5, %s313
        %p315 = pneg %p185
        %p316 = pneg %p182
        %p317 = pneg %p213
        %p318 = pneg %p210
        %s319 = sand.u32 %s200, 1
        %s320 = scalar_lea.sflag [#allocation4], %s319
        %s321 = sand.u32 %s200, 1
        %s322 = smul.addr %s321, 8
        %s323 = scalar_lea.vmem [#allocation3], %s322
        %p324 = scmp.lt.s32.totalorder %s24, 1
        %s325 = scalar_select %p324, %s24, 1
        %p326 = scmp.lt.s32.totalorder %s25, 0
        %s327 = scalar_select %p326, %s25, 0
        %s328 = sadd.s32 %s327, %s325
        %s329 = smul.addr %s328, 8
        %s330 = scalar_lea.vmem %s0, %s329
        %p331 = scmp.lt.s32.totalorder %s24, 1
        %s332 = scalar_select %p331, %s24, 1
        %s333 = scalar_lea.vmem %s1, %s332
        %p334 = scmp.lt.s32.totalorder %s24, 1
        %s335 = scalar_select %p334, %s24, 1
        %s336 = smul.addr %s335, 4
        %s337 = scalar_lea.vmem %s2, %s336
        %p338 = scmp.lt.s32.totalorder %s24, 1
        %s339 = scalar_select %p338, %s24, 1
        %s340 = smul.addr %s339, 8
        %s341 = scalar_lea.vmem %s3, %s340
        %p342 = scmp.lt.s32.totalorder %s24, 1
        %s343 = scalar_select %p342, %s24, 1
        %s344 = scalar_lea.vmem %s4, %s343
        %p345 = scmp.lt.s32.totalorder %s24, 1
        %s346 = scalar_select %p345, %s24, 1
        %s347 = scalar_lea.vmem %s5, %s346
        %p348 = scmp.eq.s32.totalorder %s25, 0
        // Predicated region
        $region45: #{tpu_custom_call.1} parent=43 // pred_check
          %p349 = pneg %p348
        $region46: #{tpu_custom_call.1} parent=43 // pred_check_branch
          %351 = sbr.rel (%p349) target = $region48
        $region47: #{tpu_custom_call.1} parent=43 // pred_region
          %v352 = vld [vmem:[%s333] sm:$0x1]
          %vm353 = vcmask 57344
          %354 = vst.msk [vmem:[#allocation2] sm:$0x1] %vm353, %v352
        $region48: #{tpu_custom_call.1} parent=43 // pred_fallthru
          _
        %v355 = vld [vmem:[%s330] sm:$0xff]
        %v356 = vld [vmem:[%s337] sm:$0xf]
        %v357 = vld [vmem:[%s344] sm:$0x1]
        %v359 = vlaneseq
        %v360 = vshrl.u32 %v359, 7
        %v361 = vsub.s32 0, %v360
        %v362 = vrot.slane %v357, %v361
        %vm364 = vcmask 31744
        %v366 = vsel %vm364, %v355, 0
        %vm368 = vcmask 1043456
        %v370 = vsel %vm368, %v356, 0
        %372 = vmatprep.subr.mxu0 0.0
        %373 = vmatpush1.msra.mxu0 %v370
        %374 = vmatprep.subr.mxu0 0.0
        %375 = vmatpush1.msra.mxu0 0.0
        %376 = vmatprep.subr.mxu0 0.0
        %377 = vmatpush1.msra.mxu0 0.0
        %378 = vmatprep.subr.mxu0 0.0
        %379 = vmatpush1.msra.mxu0 0.0
        %380 = vmatprep.subr.mxu0 0.0
        %381 = vmatpush1.msra.mxu0 0.0
        %382 = vmatprep.subr.mxu0 0.0
        %383 = vmatpush1.msra.mxu0 0.0
        %384 = vmatprep.subr.mxu0 0.0
        %385 = vmatpush1.msra.mxu0 0.0
        %386 = vmatprep.subr.mxu0 0.0
        %387 = vmatpush1.msra.mxu0 0.0
        %388 = vmatprep.subr.mxu0 0.0
        %389 = vmatpush1.msra.mxu0 0.0
        %390 = vmatprep.subr.mxu0 0.0
        %391 = vmatpush1.msra.mxu0 0.0
        %392 = vmatprep.subr.mxu0 0.0
        %393 = vmatpush1.msra.mxu0 0.0
        %394 = vmatprep.subr.mxu0 0.0
        %395 = vmatpush1.msra.mxu0 0.0
        %396 = vmatprep.subr.mxu0 0.0
        %397 = vmatpush1.msra.mxu0 0.0
        %398 = vmatprep.subr.mxu0 0.0
        %399 = vmatpush1.msra.mxu0 0.0
        %400 = vmatprep.subr.mxu0 0.0
        %401 = vmatpush1.msra.mxu0 0.0
        %402 = vmatprep.subr.mxu0 0.0
        %403 = vmatpush1.msra.mxu0 0.0
        %404 = vmatprep.subr.mxu0 0.0
        %405 = vmatpush1.msra.mxu0 0.0
        %406 = vmatprep.subr.mxu0 0.0
        %407 = vmatpush1.msra.mxu0 0.0
        %408 = vmatprep.subr.mxu0 0.0
        %409 = vmatpush1.msra.mxu0 0.0
        %410 = vmatprep.subr.mxu0 0.0
        %411 = vmatpush1.msra.mxu0 0.0
        %412 = vmatprep.subr.mxu0 0.0
        %413 = vmatpush1.msra.mxu0 0.0
        %414 = vmatprep.subr.mxu0 0.0
        %415 = vmatpush1.msra.mxu0 0.0
        %416 = vmatprep.subr.mxu0 0.0
        %417 = vmatpush1.msra.mxu0 0.0
        %418 = vmatprep.subr.mxu0 0.0
        %419 = vmatpush1.msra.mxu0 0.0
        %420 = vmatprep.subr.mxu0 0.0
        %421 = vmatpush1.msra.mxu0 0.0
        %422 = vmatprep.subr.mxu0 0.0
        %423 = vmatpush1.msra.mxu0 0.0
        %424 = vmatprep.subr.mxu0 0.0
        %425 = vmatpush1.msra.mxu0 0.0
        %426 = vmatprep.subr.mxu0 0.0
        %427 = vmatpush1.msra.mxu0 0.0
        %428 = vmatprep.subr.mxu0 0.0
        %429 = vmatpush1.msra.mxu0 0.0
        %430 = vmatprep.subr.mxu0 0.0
        %431 = vmatpush1.msra.mxu0 0.0
        %432 = vmatprep.subr.mxu0 0.0
        %433 = vmatpush1.msra.mxu0 0.0
        %434 = vmatprep.subr.mxu0 0.0
        %435 = vmatpush1.msra.mxu0 0.0
        %436 = vmatprep.mubr.f32.mxu0 0.0
        %437 = vmatmul.mubr.f32.gmra.mrb[0].mxu0 %v366
        %v438 = vpop.f32.mrb[0].mxu0
        %v439 = vadd.f32 %v362, %v438
        %v440 = vpop.f32.mrb[0].mxu0
        %441 = vdwg.mxu0
        %v442 = vtanh.pop %v439
        %v443 = vld [vmem:[%s341] sm:$0xff]
        %v444 = vld [vmem:[%s347] sm:$0x1]
        %v445 = vld [vmem:[#allocation2] sm:$0x1]
        %vm446 = vcmask 64512
        %v448 = vsel %vm446, %v445, 0
        %450 = vmatprep.subr.mxu0 0.0
        %451 = vmatpush1.msra.mxu0 %v443
        %452 = vmatprep.subr.mxu0 0.0
        %453 = vmatpush1.msra.mxu0 0.0
        %454 = vmatprep.subr.mxu0 0.0
        %455 = vmatpush1.msra.mxu0 0.0
        %456 = vmatprep.subr.mxu0 0.0
        %457 = vmatpush1.msra.mxu0 0.0
        %458 = vmatprep.subr.mxu0 0.0
        %459 = vmatpush1.msra.mxu0 0.0
        %460 = vmatprep.subr.mxu0 0.0
        %461 = vmatpush1.msra.mxu0 0.0
        %462 = vmatprep.subr.mxu0 0.0
        %463 = vmatpush1.msra.mxu0 0.0
        %464 = vmatprep.subr.mxu0 0.0
        %465 = vmatpush1.msra.mxu0 0.0
        %466 = vmatprep.subr.mxu0 0.0
        %467 = vmatpush1.msra.mxu0 0.0
        %468 = vmatprep.subr.mxu0 0.0
        %469 = vmatpush1.msra.mxu0 0.0
        %470 = vmatprep.subr.mxu0 0.0
        %471 = vmatpush1.msra.mxu0 0.0
        %472 = vmatprep.subr.mxu0 0.0
        %473 = vmatpush1.msra.mxu0 0.0
        %474 = vmatprep.subr.mxu0 0.0
        %475 = vmatpush1.msra.mxu0 0.0
        %476 = vmatprep.subr.mxu0 0.0
        %477 = vmatpush1.msra.mxu0 0.0
        %478 = vmatprep.subr.mxu0 0.0
        %479 = vmatpush1.msra.mxu0 0.0
        %480 = vmatprep.subr.mxu0 0.0
        %481 = vmatpush1.msra.mxu0 0.0
        %482 = vmatprep.subr.mxu0 0.0
        %483 = vmatpush1.msra.mxu0 0.0
        %484 = vmatprep.subr.mxu0 0.0
        %485 = vmatpush1.msra.mxu0 0.0
        %486 = vmatprep.subr.mxu0 0.0
        %487 = vmatpush1.msra.mxu0 0.0
        %488 = vmatprep.subr.mxu0 0.0
        %489 = vmatpush1.msra.mxu0 0.0
        %490 = vmatprep.subr.mxu0 0.0
        %491 = vmatpush1.msra.mxu0 0.0
        %492 = vmatprep.subr.mxu0 0.0
        %493 = vmatpush1.msra.mxu0 0.0
        %494 = vmatprep.subr.mxu0 0.0
        %495 = vmatpush1.msra.mxu0 0.0
        %496 = vmatprep.subr.mxu0 0.0
        %497 = vmatpush1.msra.mxu0 0.0
        %498 = vmatprep.subr.mxu0 0.0
        %499 = vmatpush1.msra.mxu0 0.0
        %500 = vmatprep.subr.mxu0 0.0
        %501 = vmatpush1.msra.mxu0 0.0
        %502 = vmatprep.subr.mxu0 0.0
        %503 = vmatpush1.msra.mxu0 0.0
        %504 = vmatprep.subr.mxu0 0.0
        %505 = vmatpush1.msra.mxu0 0.0
        %506 = vmatprep.subr.mxu0 0.0
        %507 = vmatpush1.msra.mxu0 0.0
        %508 = vmatprep.subr.mxu0 0.0
        %509 = vmatpush1.msra.mxu0 0.0
        %510 = vmatprep.subr.mxu0 0.0
        %511 = vmatpush1.msra.mxu0 0.0
        %512 = vmatprep.subr.mxu0 0.0
        %513 = vmatpush1.msra.mxu0 0.0
        %514 = vmatprep.mubr.f32.mxu0 0.0
        %515 = vmatmul.mubr.f32.gmra.mrb[0].mxu0 %v448
        %v516 = vpop.f32.mrb[0].mxu0
        %v517 = vadd.f32 %v444, %v516
        %v518 = vpop.f32.mrb[0].mxu0
        %519 = vdwg.mxu0
        %v520 = vtanh.pop %v517
        %v521 = vadd.f32 %v442, %v520
        %v522 = vxor.u32 %v521, 2147483648
        %v523 = vmul.f32 %v522, 1.442695
        %v524 = vpow.pop %v523
        %v525 = vadd.f32 %v524, 1.0
        %v526 = vrcp.pop %v525
        %v527 = vmul.f32 1.0, %v526
        %529 = vrot.lane.b32.xlu0 %v520, 112
        %v530 = vpop.permute.xlu0 %529
        %v532 = vmul.f32 %v527, %v530
        %534 = vrot.lane.b32.xlu0 %v532, 16
        %v535 = vpop.permute.xlu0 %534
        %v537 = vadd.f32 %v442, %v535
        %v538 = vtanh.pop %v537
        %v539 = vlaneseq
        %v540 = vshrl.u32 %v539, 7
        %v541 = vsub.s32 0, %v540
        %v542 = vrot.slane %v445, %v541
        %543 = vrot.lane.b32.xlu0 %v542, 8
        %v544 = vpop.permute.xlu0 %543
        %v546 = vmul.f32 %v527, %v544
        %v547 = vsub.f32 1.0, %v527
        %549 = vrot.lane.b32.xlu0 %v538, 120
        %v550 = vpop.permute.xlu0 %549
        %v552 = vmul.f32 %v547, %v550
        %v553 = vadd.f32 %v546, %v552
        %555 = vrot.lane.b32.xlu0 %v553, 120
        %v556 = vpop.permute.xlu0 %555
        %vm558 = vcmask 57344
        %559 = vst.msk [vmem:[%s323] sm:$0x1] %vm558, %v556
        %v560 = vsel %vm446, %v556, 0
        %562 = vmatprep.subr.mxu0 0.0
        %563 = vmatpush1.msra.mxu0 %v443
        %564 = vmatprep.subr.mxu0 0.0
        %565 = vmatpush1.msra.mxu0 0.0
        %566 = vmatprep.subr.mxu0 0.0
        %567 = vmatpush1.msra.mxu0 0.0
        %568 = vmatprep.subr.mxu0 0.0
        %569 = vmatpush1.msra.mxu0 0.0
        %570 = vmatprep.subr.mxu0 0.0
        %571 = vmatpush1.msra.mxu0 0.0
        %572 = vmatprep.subr.mxu0 0.0
        %573 = vmatpush1.msra.mxu0 0.0
        %574 = vmatprep.subr.mxu0 0.0
        %575 = vmatpush1.msra.mxu0 0.0
        %576 = vmatprep.subr.mxu0 0.0
        %577 = vmatpush1.msra.mxu0 0.0
        %578 = vmatprep.subr.mxu0 0.0
        %579 = vmatpush1.msra.mxu0 0.0
        %580 = vmatprep.subr.mxu0 0.0
        %581 = vmatpush1.msra.mxu0 0.0
        %582 = vmatprep.subr.mxu0 0.0
        %583 = vmatpush1.msra.mxu0 0.0
        %584 = vmatprep.subr.mxu0 0.0
        %585 = vmatpush1.msra.mxu0 0.0
        %586 = vmatprep.subr.mxu0 0.0
        %587 = vmatpush1.msra.mxu0 0.0
        %588 = vmatprep.subr.mxu0 0.0
        %589 = vmatpush1.msra.mxu0 0.0
        %590 = vmatprep.subr.mxu0 0.0
        %591 = vmatpush1.msra.mxu0 0.0
        %592 = vmatprep.subr.mxu0 0.0
        %593 = vmatpush1.msra.mxu0 0.0
        %594 = vmatprep.subr.mxu0 0.0
        %595 = vmatpush1.msra.mxu0 0.0
        %596 = vmatprep.subr.mxu0 0.0
        %597 = vmatpush1.msra.mxu0 0.0
        %598 = vmatprep.subr.mxu0 0.0
        %599 = vmatpush1.msra.mxu0 0.0
        %600 = vmatprep.subr.mxu0 0.0
        %601 = vmatpush1.msra.mxu0 0.0
        %602 = vmatprep.subr.mxu0 0.0
        %603 = vmatpush1.msra.mxu0 0.0
        %604 = vmatprep.subr.mxu0 0.0
        %605 = vmatpush1.msra.mxu0 0.0
        %606 = vmatprep.subr.mxu0 0.0
        %607 = vmatpush1.msra.mxu0 0.0
        %608 = vmatprep.subr.mxu0 0.0
        %609 = vmatpush1.msra.mxu0 0.0
        %610 = vmatprep.subr.mxu0 0.0
        %611 = vmatpush1.msra.mxu0 0.0
        %612 = vmatprep.subr.mxu0 0.0
        %613 = vmatpush1.msra.mxu0 0.0
        %614 = vmatprep.subr.mxu0 0.0
        %615 = vmatpush1.msra.mxu0 0.0
        %616 = vmatprep.subr.mxu0 0.0
        %617 = vmatpush1.msra.mxu0 0.0
        %618 = vmatprep.subr.mxu0 0.0
        %619 = vmatpush1.msra.mxu0 0.0
        %620 = vmatprep.subr.mxu0 0.0
        %621 = vmatpush1.msra.mxu0 0.0
        %622 = vmatprep.subr.mxu0 0.0
        %623 = vmatpush1.msra.mxu0 0.0
        %624 = vmatprep.subr.mxu0 0.0
        %625 = vmatpush1.msra.mxu0 0.0
        %626 = vmatprep.mubr.f32.mxu0 0.0
        %627 = vmatmul.mubr.f32.gmra.mrb[0].mxu0 %v560
        %v628 = vpop.f32.mrb[0].mxu0
        %v629 = vadd.f32 %v444, %v628
        %v630 = vpop.f32.mrb[0].mxu0
        %631 = vdwg.mxu0
        %v632 = vtanh.pop %v629
        %v634 = vrot.slane %v632, 7
        %v636 = vadd.f32 %v442, %v634
        %v637 = vxor.u32 %v636, 2147483648
        %v638 = vmul.f32 %v637, 1.442695
        %v639 = vpow.pop %v638
        %v640 = vadd.f32 %v639, 1.0
        %v641 = vrcp.pop %v640
        %v642 = vmul.f32 1.0, %v641
        %643 = vrot.lane.b32.xlu0 %v634, 112
        %v644 = vpop.permute.xlu0 %643
        %v646 = vmul.f32 %v642, %v644
        %648 = vrot.lane.b32.xlu0 %v646, 16
        %v649 = vpop.permute.xlu0 %648
        %v651 = vadd.f32 %v442, %v649
        %v652 = vtanh.pop %v651
        %v653 = vrot.slane %v553, 7
        %v655 = vmul.f32 %v642, %v653
        %v656 = vsub.f32 1.0, %v642
        %658 = vrot.lane.b32.xlu0 %v652, 120
        %v659 = vpop.permute.xlu0 %658
        %v661 = vmul.f32 %v656, %v659
        %v662 = vadd.f32 %v655, %v661
        %664 = vrot.lane.b32.xlu0 %v662, 120
        %v665 = vpop.permute.xlu0 %664
        %vm667 = vcmask 58369
        %668 = vst.msk [vmem:[%s323] sm:$0x2] %vm667, %v665
        %v669 = vrot.slane %v662, 1
        %670 = vrot.lane.b32.xlu0 %v669, 120
        %v671 = vpop.permute.xlu0 %670
        %v672 = vsel %vm446, %v671, 0
        %674 = vmatprep.subr.mxu0 0.0
        %675 = vmatpush1.msra.mxu0 %v443
        %676 = vmatprep.subr.mxu0 0.0
        %677 = vmatpush1.msra.mxu0 0.0
        %678 = vmatprep.subr.mxu0 0.0
        %679 = vmatpush1.msra.mxu0 0.0
        %680 = vmatprep.subr.mxu0 0.0
        %681 = vmatpush1.msra.mxu0 0.0
        %682 = vmatprep.subr.mxu0 0.0
        %683 = vmatpush1.msra.mxu0 0.0
        %684 = vmatprep.subr.mxu0 0.0
        %685 = vmatpush1.msra.mxu0 0.0
        %686 = vmatprep.subr.mxu0 0.0
        %687 = vmatpush1.msra.mxu0 0.0
        %688 = vmatprep.subr.mxu0 0.0
        %689 = vmatpush1.msra.mxu0 0.0
        %690 = vmatprep.subr.mxu0 0.0
        %691 = vmatpush1.msra.mxu0 0.0
        %692 = vmatprep.subr.mxu0 0.0
        %693 = vmatpush1.msra.mxu0 0.0
        %694 = vmatprep.subr.mxu0 0.0
        %695 = vmatpush1.msra.mxu0 0.0
        %696 = vmatprep.subr.mxu0 0.0
        %697 = vmatpush1.msra.mxu0 0.0
        %698 = vmatprep.subr.mxu0 0.0
        %699 = vmatpush1.msra.mxu0 0.0
        %700 = vmatprep.subr.mxu0 0.0
        %701 = vmatpush1.msra.mxu0 0.0
        %702 = vmatprep.subr.mxu0 0.0
        %703 = vmatpush1.msra.mxu0 0.0
        %704 = vmatprep.subr.mxu0 0.0
        %705 = vmatpush1.msra.mxu0 0.0
        %706 = vmatprep.subr.mxu0 0.0
        %707 = vmatpush1.msra.mxu0 0.0
        %708 = vmatprep.subr.mxu0 0.0
        %709 = vmatpush1.msra.mxu0 0.0
        %710 = vmatprep.subr.mxu0 0.0
        %711 = vmatpush1.msra.mxu0 0.0
        %712 = vmatprep.subr.mxu0 0.0
        %713 = vmatpush1.msra.mxu0 0.0
        %714 = vmatprep.subr.mxu0 0.0
        %715 = vmatpush1.msra.mxu0 0.0
        %716 = vmatprep.subr.mxu0 0.0
        %717 = vmatpush1.msra.mxu0 0.0
        %718 = vmatprep.subr.mxu0 0.0
        %719 = vmatpush1.msra.mxu0 0.0
        %720 = vmatprep.subr.mxu0 0.0
        %721 = vmatpush1.msra.mxu0 0.0
        %722 = vmatprep.subr.mxu0 0.0
        %723 = vmatpush1.msra.mxu0 0.0
        %724 = vmatprep.subr.mxu0 0.0
        %725 = vmatpush1.msra.mxu0 0.0
        %726 = vmatprep.subr.mxu0 0.0
        %727 = vmatpush1.msra.mxu0 0.0
        %728 = vmatprep.subr.mxu0 0.0
        %729 = vmatpush1.msra.mxu0 0.0
        %730 = vmatprep.subr.mxu0 0.0
        %731 = vmatpush1.msra.mxu0 0.0
        %732 = vmatprep.subr.mxu0 0.0
        %733 = vmatpush1.msra.mxu0 0.0
        %734 = vmatprep.subr.mxu0 0.0
        %735 = vmatpush1.msra.mxu0 0.0
        %736 = vmatprep.subr.mxu0 0.0
        %737 = vmatpush1.msra.mxu0 0.0
        %738 = vmatprep.mubr.f32.mxu0 0.0
        %739 = vmatmul.mubr.f32.gmra.mrb[0].mxu0 %v672
        %v740 = vpop.f32.mrb[0].mxu0
        %v741 = vadd.f32 %v444, %v740
        %v742 = vpop.f32.mrb[0].mxu0
        %743 = vdwg.mxu0
        %v744 = vtanh.pop %v741
        %v746 = vrot.slane %v744, 6
        %v748 = vadd.f32 %v442, %v746
        %v749 = vxor.u32 %v748, 2147483648
        %v750 = vmul.f32 %v749, 1.442695
        %v751 = vpow.pop %v750
        %v752 = vadd.f32 %v751, 1.0
        %v753 = vrcp.pop %v752
        %v754 = vmul.f32 1.0, %v753
        %755 = vrot.lane.b32.xlu0 %v746, 112
        %v756 = vpop.permute.xlu0 %755
        %v758 = vmul.f32 %v754, %v756
        %760 = vrot.lane.b32.xlu0 %v758, 16
        %v761 = vpop.permute.xlu0 %760
        %v763 = vadd.f32 %v442, %v761
        %v764 = vtanh.pop %v763
        %v765 = vrot.slane %v662, 7
        %v767 = vmul.f32 %v754, %v765
        %v768 = vsub.f32 1.0, %v754
        %770 = vrot.lane.b32.xlu0 %v764, 120
        %v771 = vpop.permute.xlu0 %770
        %v773 = vmul.f32 %v768, %v771
        %v774 = vadd.f32 %v767, %v773
        %776 = vrot.lane.b32.xlu0 %v774, 120
        %v777 = vpop.permute.xlu0 %776
        %vm779 = vcmask 59394
        %780 = vst.msk [vmem:[%s323] sm:$0x4] %vm779, %v777
        %v781 = vrot.slane %v774, 2
        %782 = vrot.lane.b32.xlu0 %v781, 120
        %v783 = vpop.permute.xlu0 %782
        %v784 = vsel %vm446, %v783, 0
        %786 = vmatprep.subr.mxu0 0.0
        %787 = vmatpush1.msra.mxu0 %v443
        %788 = vmatprep.subr.mxu0 0.0
        %789 = vmatpush1.msra.mxu0 0.0
        %790 = vmatprep.subr.mxu0 0.0
        %791 = vmatpush1.msra.mxu0 0.0
        %792 = vmatprep.subr.mxu0 0.0
        %793 = vmatpush1.msra.mxu0 0.0
        %794 = vmatprep.subr.mxu0 0.0
        %795 = vmatpush1.msra.mxu0 0.0
        %796 = vmatprep.subr.mxu0 0.0
        %797 = vmatpush1.msra.mxu0 0.0
        %798 = vmatprep.subr.mxu0 0.0
        %799 = vmatpush1.msra.mxu0 0.0
        %800 = vmatprep.subr.mxu0 0.0
        %801 = vmatpush1.msra.mxu0 0.0
        %802 = vmatprep.subr.mxu0 0.0
        %803 = vmatpush1.msra.mxu0 0.0
        %804 = vmatprep.subr.mxu0 0.0
        %805 = vmatpush1.msra.mxu0 0.0
        %806 = vmatprep.subr.mxu0 0.0
        %807 = vmatpush1.msra.mxu0 0.0
        %808 = vmatprep.subr.mxu0 0.0
        %809 = vmatpush1.msra.mxu0 0.0
        %810 = vmatprep.subr.mxu0 0.0
        %811 = vmatpush1.msra.mxu0 0.0
        %812 = vmatprep.subr.mxu0 0.0
        %813 = vmatpush1.msra.mxu0 0.0
        %814 = vmatprep.subr.mxu0 0.0
        %815 = vmatpush1.msra.mxu0 0.0
        %816 = vmatprep.subr.mxu0 0.0
        %817 = vmatpush1.msra.mxu0 0.0
        %818 = vmatprep.subr.mxu0 0.0
        %819 = vmatpush1.msra.mxu0 0.0
        %820 = vmatprep.subr.mxu0 0.0
        %821 = vmatpush1.msra.mxu0 0.0
        %822 = vmatprep.subr.mxu0 0.0
        %823 = vmatpush1.msra.mxu0 0.0
        %824 = vmatprep.subr.mxu0 0.0
        %825 = vmatpush1.msra.mxu0 0.0
        %826 = vmatprep.subr.mxu0 0.0
        %827 = vmatpush1.msra.mxu0 0.0
        %828 = vmatprep.subr.mxu0 0.0
        %829 = vmatpush1.msra.mxu0 0.0
        %830 = vmatprep.subr.mxu0 0.0
        %831 = vmatpush1.msra.mxu0 0.0
        %832 = vmatprep.subr.mxu0 0.0
        %833 = vmatpush1.msra.mxu0 0.0
        %834 = vmatprep.subr.mxu0 0.0
        %835 = vmatpush1.msra.mxu0 0.0
        %836 = vmatprep.subr.mxu0 0.0
        %837 = vmatpush1.msra.mxu0 0.0
        %838 = vmatprep.subr.mxu0 0.0
        %839 = vmatpush1.msra.mxu0 0.0
        %840 = vmatprep.subr.mxu0 0.0
        %841 = vmatpush1.msra.mxu0 0.0
        %842 = vmatprep.subr.mxu0 0.0
        %843 = vmatpush1.msra.mxu0 0.0
        %844 = vmatprep.subr.mxu0 0.0
        %845 = vmatpush1.msra.mxu0 0.0
        %846 = vmatprep.subr.mxu0 0.0
        %847 = vmatpush1.msra.mxu0 0.0
        %848 = vmatprep.subr.mxu0 0.0
        %849 = vmatpush1.msra.mxu0 0.0
        %850 = vmatprep.mubr.f32.mxu0 0.0
        %851 = vmatmul.mubr.f32.gmra.mrb[0].mxu0 %v784
        %v852 = vpop.f32.mrb[0].mxu0
        %v853 = vadd.f32 %v444, %v852
        %v854 = vpop.f32.mrb[0].mxu0
        %855 = vdwg.mxu0
        %v856 = vtanh.pop %v853
        %v858 = vrot.slane %v856, 5
        %v860 = vadd.f32 %v442, %v858
        %v861 = vxor.u32 %v860, 2147483648
        %v862 = vmul.f32 %v861, 1.442695
        %v863 = vpow.pop %v862
        %v864 = vadd.f32 %v863, 1.0
        %v865 = vrcp.pop %v864
        %v866 = vmul.f32 1.0, %v865
        %867 = vrot.lane.b32.xlu0 %v858, 112
        %v868 = vpop.permute.xlu0 %867
        %v870 = vmul.f32 %v866, %v868
        %872 = vrot.lane.b32.xlu0 %v870, 16
        %v873 = vpop.permute.xlu0 %872
        %v875 = vadd.f32 %v442, %v873
        %v876 = vtanh.pop %v875
        %v877 = vrot.slane %v774, 7
        %v879 = vmul.f32 %v866, %v877
        %v880 = vsub.f32 1.0, %v866
        %882 = vrot.lane.b32.xlu0 %v876, 120
        %v883 = vpop.permute.xlu0 %882
        %v885 = vmul.f32 %v880, %v883
        %v886 = vadd.f32 %v879, %v885
        %888 = vrot.lane.b32.xlu0 %v886, 120
        %v889 = vpop.permute.xlu0 %888
        %vm891 = vcmask 60419
        %892 = vst.msk [vmem:[%s323] sm:$0x8] %vm891, %v889
        %v893 = vrot.slane %v886, 3
        %894 = vrot.lane.b32.xlu0 %v893, 120
        %v895 = vpop.permute.xlu0 %894
        %v896 = vsel %vm446, %v895, 0
        %898 = vmatprep.subr.mxu0 0.0
        %899 = vmatpush1.msra.mxu0 %v443
        %900 = vmatprep.subr.mxu0 0.0
        %901 = vmatpush1.msra.mxu0 0.0
        %902 = vmatprep.subr.mxu0 0.0
        %903 = vmatpush1.msra.mxu0 0.0
        %904 = vmatprep.subr.mxu0 0.0
        %905 = vmatpush1.msra.mxu0 0.0
        %906 = vmatprep.subr.mxu0 0.0
        %907 = vmatpush1.msra.mxu0 0.0
        %908 = vmatprep.subr.mxu0 0.0
        %909 = vmatpush1.msra.mxu0 0.0
        %910 = vmatprep.subr.mxu0 0.0
        %911 = vmatpush1.msra.mxu0 0.0
        %912 = vmatprep.subr.mxu0 0.0
        %913 = vmatpush1.msra.mxu0 0.0
        %914 = vmatprep.subr.mxu0 0.0
        %915 = vmatpush1.msra.mxu0 0.0
        %916 = vmatprep.subr.mxu0 0.0
        %917 = vmatpush1.msra.mxu0 0.0
        %918 = vmatprep.subr.mxu0 0.0
        %919 = vmatpush1.msra.mxu0 0.0
        %920 = vmatprep.subr.mxu0 0.0
        %921 = vmatpush1.msra.mxu0 0.0
        %922 = vmatprep.subr.mxu0 0.0
        %923 = vmatpush1.msra.mxu0 0.0
        %924 = vmatprep.subr.mxu0 0.0
        %925 = vmatpush1.msra.mxu0 0.0
        %926 = vmatprep.subr.mxu0 0.0
        %927 = vmatpush1.msra.mxu0 0.0
        %928 = vmatprep.subr.mxu0 0.0
        %929 = vmatpush1.msra.mxu0 0.0
        %930 = vmatprep.subr.mxu0 0.0
        %931 = vmatpush1.msra.mxu0 0.0
        %932 = vmatprep.subr.mxu0 0.0
        %933 = vmatpush1.msra.mxu0 0.0
        %934 = vmatprep.subr.mxu0 0.0
        %935 = vmatpush1.msra.mxu0 0.0
        %936 = vmatprep.subr.mxu0 0.0
        %937 = vmatpush1.msra.mxu0 0.0
        %938 = vmatprep.subr.mxu0 0.0
        %939 = vmatpush1.msra.mxu0 0.0
        %940 = vmatprep.subr.mxu0 0.0
        %941 = vmatpush1.msra.mxu0 0.0
        %942 = vmatprep.subr.mxu0 0.0
        %943 = vmatpush1.msra.mxu0 0.0
        %944 = vmatprep.subr.mxu0 0.0
        %945 = vmatpush1.msra.mxu0 0.0
        %946 = vmatprep.subr.mxu0 0.0
        %947 = vmatpush1.msra.mxu0 0.0
        %948 = vmatprep.subr.mxu0 0.0
        %949 = vmatpush1.msra.mxu0 0.0
        %950 = vmatprep.subr.mxu0 0.0
        %951 = vmatpush1.msra.mxu0 0.0
        %952 = vmatprep.subr.mxu0 0.0
        %953 = vmatpush1.msra.mxu0 0.0
        %954 = vmatprep.subr.mxu0 0.0
        %955 = vmatpush1.msra.mxu0 0.0
        %956 = vmatprep.subr.mxu0 0.0
        %957 = vmatpush1.msra.mxu0 0.0
        %958 = vmatprep.subr.mxu0 0.0
        %959 = vmatpush1.msra.mxu0 0.0
        %960 = vmatprep.subr.mxu0 0.0
        %961 = vmatpush1.msra.mxu0 0.0
        %962 = vmatprep.mubr.f32.mxu0 0.0
        %963 = vmatmul.mubr.f32.gmra.mrb[0].mxu0 %v896
        %v964 = vpop.f32.mrb[0].mxu0
        %v965 = vadd.f32 %v444, %v964
        %v966 = vpop.f32.mrb[0].mxu0
        %967 = vdwg.mxu0
        %v968 = vtanh.pop %v965
        %v970 = vrot.slane %v968, 4
        %v972 = vadd.f32 %v442, %v970
        %v973 = vxor.u32 %v972, 2147483648
        %v974 = vmul.f32 %v973, 1.442695
        %v975 = vpow.pop %v974
        %v976 = vadd.f32 %v975, 1.0
        %v977 = vrcp.pop %v976
        %v978 = vmul.f32 1.0, %v977
        %979 = vrot.lane.b32.xlu0 %v970, 112
        %v980 = vpop.permute.xlu0 %979
        %v982 = vmul.f32 %v978, %v980
        %984 = vrot.lane.b32.xlu0 %v982, 16
        %v985 = vpop.permute.xlu0 %984
        %v987 = vadd.f32 %v442, %v985
        %v988 = vtanh.pop %v987
        %v989 = vrot.slane %v886, 7
        %v991 = vmul.f32 %v978, %v989
        %v992 = vsub.f32 1.0, %v978
        %994 = vrot.lane.b32.xlu0 %v988, 120
        %v995 = vpop.permute.xlu0 %994
        %v997 = vmul.f32 %v992, %v995
        %v998 = vadd.f32 %v991, %v997
        %1000 = vrot.lane.b32.xlu0 %v998, 120
        %v1001 = vpop.permute.xlu0 %1000
        %vm1003 = vcmask 61444
        %1004 = vst.msk [vmem:[%s323] sm:$0x10] %vm1003, %v1001
        %v1005 = vrot.slane %v998, 4
        %1006 = vrot.lane.b32.xlu0 %v1005, 120
        %v1007 = vpop.permute.xlu0 %1006
        %v1008 = vsel %vm446, %v1007, 0
        %1010 = vmatprep.subr.mxu0 0.0
        %1011 = vmatpush1.msra.mxu0 %v443
        %1012 = vmatprep.subr.mxu0 0.0
        %1013 = vmatpush1.msra.mxu0 0.0
        %1014 = vmatprep.subr.mxu0 0.0
        %1015 = vmatpush1.msra.mxu0 0.0
        %1016 = vmatprep.subr.mxu0 0.0
        %1017 = vmatpush1.msra.mxu0 0.0
        %1018 = vmatprep.subr.mxu0 0.0
        %1019 = vmatpush1.msra.mxu0 0.0
        %1020 = vmatprep.subr.mxu0 0.0
        %1021 = vmatpush1.msra.mxu0 0.0
        %1022 = vmatprep.subr.mxu0 0.0
        %1023 = vmatpush1.msra.mxu0 0.0
        %1024 = vmatprep.subr.mxu0 0.0
        %1025 = vmatpush1.msra.mxu0 0.0
        %1026 = vmatprep.subr.mxu0 0.0
        %1027 = vmatpush1.msra.mxu0 0.0
        %1028 = vmatprep.subr.mxu0 0.0
        %1029 = vmatpush1.msra.mxu0 0.0
        %1030 = vmatprep.subr.mxu0 0.0
        %1031 = vmatpush1.msra.mxu0 0.0
        %1032 = vmatprep.subr.mxu0 0.0
        %1033 = vmatpush1.msra.mxu0 0.0
        %1034 = vmatprep.subr.mxu0 0.0
        %1035 = vmatpush1.msra.mxu0 0.0
        %1036 = vmatprep.subr.mxu0 0.0
        %1037 = vmatpush1.msra.mxu0 0.0
        %1038 = vmatprep.subr.mxu0 0.0
        %1039 = vmatpush1.msra.mxu0 0.0
        %1040 = vmatprep.subr.mxu0 0.0
        %1041 = vmatpush1.msra.mxu0 0.0
        %1042 = vmatprep.subr.mxu0 0.0
        %1043 = vmatpush1.msra.mxu0 0.0
        %1044 = vmatprep.subr.mxu0 0.0
        %1045 = vmatpush1.msra.mxu0 0.0
        %1046 = vmatprep.subr.mxu0 0.0
        %1047 = vmatpush1.msra.mxu0 0.0
        %1048 = vmatprep.subr.mxu0 0.0
        %1049 = vmatpush1.msra.mxu0 0.0
        %1050 = vmatprep.subr.mxu0 0.0
        %1051 = vmatpush1.msra.mxu0 0.0
        %1052 = vmatprep.subr.mxu0 0.0
        %1053 = vmatpush1.msra.mxu0 0.0
        %1054 = vmatprep.subr.mxu0 0.0
        %1055 = vmatpush1.msra.mxu0 0.0
        %1056 = vmatprep.subr.mxu0 0.0
        %1057 = vmatpush1.msra.mxu0 0.0
        %1058 = vmatprep.subr.mxu0 0.0
        %1059 = vmatpush1.msra.mxu0 0.0
        %1060 = vmatprep.subr.mxu0 0.0
        %1061 = vmatpush1.msra.mxu0 0.0
        %1062 = vmatprep.subr.mxu0 0.0
        %1063 = vmatpush1.msra.mxu0 0.0
        %1064 = vmatprep.subr.mxu0 0.0
        %1065 = vmatpush1.msra.mxu0 0.0
        %1066 = vmatprep.subr.mxu0 0.0
        %1067 = vmatpush1.msra.mxu0 0.0
        %1068 = vmatprep.subr.mxu0 0.0
        %1069 = vmatpush1.msra.mxu0 0.0
        %1070 = vmatprep.subr.mxu0 0.0
        %1071 = vmatpush1.msra.mxu0 0.0
        %1072 = vmatprep.subr.mxu0 0.0
        %1073 = vmatpush1.msra.mxu0 0.0
        %1074 = vmatprep.mubr.f32.mxu0 0.0
        %1075 = vmatmul.mubr.f32.gmra.mrb[0].mxu0 %v1008
        %v1076 = vpop.f32.mrb[0].mxu0
        %v1077 = vadd.f32 %v444, %v1076
        %v1078 = vpop.f32.mrb[0].mxu0
        %1079 = vdwg.mxu0
        %v1080 = vtanh.pop %v1077
        %v1082 = vrot.slane %v1080, 3
        %v1084 = vadd.f32 %v442, %v1082
        %v1085 = vxor.u32 %v1084, 2147483648
        %v1086 = vmul.f32 %v1085, 1.442695
        %v1087 = vpow.pop %v1086
        %v1088 = vadd.f32 %v1087, 1.0
        %v1089 = vrcp.pop %v1088
        %v1090 = vmul.f32 1.0, %v1089
        %1091 = vrot.lane.b32.xlu0 %v1082, 112
        %v1092 = vpop.permute.xlu0 %1091
        %v1094 = vmul.f32 %v1090, %v1092
        %1096 = vrot.lane.b32.xlu0 %v1094, 16
        %v1097 = vpop.permute.xlu0 %1096
        %v1099 = vadd.f32 %v442, %v1097
        %v1100 = vtanh.pop %v1099
        %v1101 = vrot.slane %v998, 7
        %v1103 = vmul.f32 %v1090, %v1101
        %v1104 = vsub.f32 1.0, %v1090
        %1106 = vrot.lane.b32.xlu0 %v1100, 120
        %v1107 = vpop.permute.xlu0 %1106
        %v1109 = vmul.f32 %v1104, %v1107
        %v1110 = vadd.f32 %v1103, %v1109
        %1112 = vrot.lane.b32.xlu0 %v1110, 120
        %v1113 = vpop.permute.xlu0 %1112
        %vm1115 = vcmask 62469
        %1116 = vst.msk [vmem:[%s323] sm:$0x20] %vm1115, %v1113
        %v1117 = vrot.slane %v1110, 5
        %1118 = vrot.lane.b32.xlu0 %v1117, 120
        %v1119 = vpop.permute.xlu0 %1118
        %v1120 = vsel %vm446, %v1119, 0
        %1122 = vmatprep.subr.mxu0 0.0
        %1123 = vmatpush1.msra.mxu0 %v443
        %1124 = vmatprep.subr.mxu0 0.0
        %1125 = vmatpush1.msra.mxu0 0.0
        %1126 = vmatprep.subr.mxu0 0.0
        %1127 = vmatpush1.msra.mxu0 0.0
        %1128 = vmatprep.subr.mxu0 0.0
        %1129 = vmatpush1.msra.mxu0 0.0
        %1130 = vmatprep.subr.mxu0 0.0
        %1131 = vmatpush1.msra.mxu0 0.0
        %1132 = vmatprep.subr.mxu0 0.0
        %1133 = vmatpush1.msra.mxu0 0.0
        %1134 = vmatprep.subr.mxu0 0.0
        %1135 = vmatpush1.msra.mxu0 0.0
        %1136 = vmatprep.subr.mxu0 0.0
        %1137 = vmatpush1.msra.mxu0 0.0
        %1138 = vmatprep.subr.mxu0 0.0
        %1139 = vmatpush1.msra.mxu0 0.0
        %1140 = vmatprep.subr.mxu0 0.0
        %1141 = vmatpush1.msra.mxu0 0.0
        %1142 = vmatprep.subr.mxu0 0.0
        %1143 = vmatpush1.msra.mxu0 0.0
        %1144 = vmatprep.subr.mxu0 0.0
        %1145 = vmatpush1.msra.mxu0 0.0
        %1146 = vmatprep.subr.mxu0 0.0
        %1147 = vmatpush1.msra.mxu0 0.0
        %1148 = vmatprep.subr.mxu0 0.0
        %1149 = vmatpush1.msra.mxu0 0.0
        %1150 = vmatprep.subr.mxu0 0.0
        %1151 = vmatpush1.msra.mxu0 0.0
        %1152 = vmatprep.subr.mxu0 0.0
        %1153 = vmatpush1.msra.mxu0 0.0
        %1154 = vmatprep.subr.mxu0 0.0
        %1155 = vmatpush1.msra.mxu0 0.0
        %1156 = vmatprep.subr.mxu0 0.0
        %1157 = vmatpush1.msra.mxu0 0.0
        %1158 = vmatprep.subr.mxu0 0.0
        %1159 = vmatpush1.msra.mxu0 0.0
        %1160 = vmatprep.subr.mxu0 0.0
        %1161 = vmatpush1.msra.mxu0 0.0
        %1162 = vmatprep.subr.mxu0 0.0
        %1163 = vmatpush1.msra.mxu0 0.0
        %1164 = vmatprep.subr.mxu0 0.0
        %1165 = vmatpush1.msra.mxu0 0.0
        %1166 = vmatprep.subr.mxu0 0.0
        %1167 = vmatpush1.msra.mxu0 0.0
        %1168 = vmatprep.subr.mxu0 0.0
        %1169 = vmatpush1.msra.mxu0 0.0
        %1170 = vmatprep.subr.mxu0 0.0
        %1171 = vmatpush1.msra.mxu0 0.0
        %1172 = vmatprep.subr.mxu0 0.0
        %1173 = vmatpush1.msra.mxu0 0.0
        %1174 = vmatprep.subr.mxu0 0.0
        %1175 = vmatpush1.msra.mxu0 0.0
        %1176 = vmatprep.subr.mxu0 0.0
        %1177 = vmatpush1.msra.mxu0 0.0
        %1178 = vmatprep.subr.mxu0 0.0
        %1179 = vmatpush1.msra.mxu0 0.0
        %1180 = vmatprep.subr.mxu0 0.0
        %1181 = vmatpush1.msra.mxu0 0.0
        %1182 = vmatprep.subr.mxu0 0.0
        %1183 = vmatpush1.msra.mxu0 0.0
        %1184 = vmatprep.subr.mxu0 0.0
        %1185 = vmatpush1.msra.mxu0 0.0
        %1186 = vmatprep.mubr.f32.mxu0 0.0
        %1187 = vmatmul.mubr.f32.gmra.mrb[0].mxu0 %v1120
        %v1188 = vpop.f32.mrb[0].mxu0
        %v1189 = vadd.f32 %v444, %v1188
        %v1190 = vpop.f32.mrb[0].mxu0
        %1191 = vdwg.mxu0
        %v1192 = vtanh.pop %v1189
        %v1194 = vrot.slane %v1192, 2
        %v1196 = vadd.f32 %v442, %v1194
        %v1197 = vxor.u32 %v1196, 2147483648
        %v1198 = vmul.f32 %v1197, 1.442695
        %v1199 = vpow.pop %v1198
        %v1200 = vadd.f32 %v1199, 1.0
        %v1201 = vrcp.pop %v1200
        %v1202 = vmul.f32 1.0, %v1201
        %1203 = vrot.lane.b32.xlu0 %v1194, 112
        %v1204 = vpop.permute.xlu0 %1203
        %v1206 = vmul.f32 %v1202, %v1204
        %1208 = vrot.lane.b32.xlu0 %v1206, 16
        %v1209 = vpop.permute.xlu0 %1208
        %v1211 = vadd.f32 %v442, %v1209
        %v1212 = vtanh.pop %v1211
        %v1213 = vrot.slane %v1110, 7
        %v1215 = vmul.f32 %v1202, %v1213
        %v1216 = vsub.f32 1.0, %v1202
        %1218 = vrot.lane.b32.xlu0 %v1212, 120
        %v1219 = vpop.permute.xlu0 %1218
        %v1221 = vmul.f32 %v1216, %v1219
        %v1222 = vadd.f32 %v1215, %v1221
        %1224 = vrot.lane.b32.xlu0 %v1222, 120
        %v1225 = vpop.permute.xlu0 %1224
        %vm1227 = vcmask 63494
        %1228 = vst.msk [vmem:[%s323] sm:$0x40] %vm1227, %v1225
        %v1229 = vrot.slane %v1222, 6
        %1230 = vrot.lane.b32.xlu0 %v1229, 120
        %v1231 = vpop.permute.xlu0 %1230
        %v1232 = vsel %vm446, %v1231, 0
        %1234 = vmatprep.subr.mxu0 0.0
        %1235 = vmatpush1.msra.mxu0 %v443
        %1236 = vmatprep.subr.mxu0 0.0
        %1237 = vmatpush1.msra.mxu0 0.0
        %1238 = vmatprep.subr.mxu0 0.0
        %1239 = vmatpush1.msra.mxu0 0.0
        %1240 = vmatprep.subr.mxu0 0.0
        %1241 = vmatpush1.msra.mxu0 0.0
        %1242 = vmatprep.subr.mxu0 0.0
        %1243 = vmatpush1.msra.mxu0 0.0
        %1244 = vmatprep.subr.mxu0 0.0
        %1245 = vmatpush1.msra.mxu0 0.0
        %1246 = vmatprep.subr.mxu0 0.0
        %1247 = vmatpush1.msra.mxu0 0.0
        %1248 = vmatprep.subr.mxu0 0.0
        %1249 = vmatpush1.msra.mxu0 0.0
        %1250 = vmatprep.subr.mxu0 0.0
        %1251 = vmatpush1.msra.mxu0 0.0
        %1252 = vmatprep.subr.mxu0 0.0
        %1253 = vmatpush1.msra.mxu0 0.0
        %1254 = vmatprep.subr.mxu0 0.0
        %1255 = vmatpush1.msra.mxu0 0.0
        %1256 = vmatprep.subr.mxu0 0.0
        %1257 = vmatpush1.msra.mxu0 0.0
        %1258 = vmatprep.subr.mxu0 0.0
        %1259 = vmatpush1.msra.mxu0 0.0
        %1260 = vmatprep.subr.mxu0 0.0
        %1261 = vmatpush1.msra.mxu0 0.0
        %1262 = vmatprep.subr.mxu0 0.0
        %1263 = vmatpush1.msra.mxu0 0.0
        %1264 = vmatprep.subr.mxu0 0.0
        %1265 = vmatpush1.msra.mxu0 0.0
        %1266 = vmatprep.subr.mxu0 0.0
        %1267 = vmatpush1.msra.mxu0 0.0
        %1268 = vmatprep.subr.mxu0 0.0
        %1269 = vmatpush1.msra.mxu0 0.0
        %1270 = vmatprep.subr.mxu0 0.0
        %1271 = vmatpush1.msra.mxu0 0.0
        %1272 = vmatprep.subr.mxu0 0.0
        %1273 = vmatpush1.msra.mxu0 0.0
        %1274 = vmatprep.subr.mxu0 0.0
        %1275 = vmatpush1.msra.mxu0 0.0
        %1276 = vmatprep.subr.mxu0 0.0
        %1277 = vmatpush1.msra.mxu0 0.0
        %1278 = vmatprep.subr.mxu0 0.0
        %1279 = vmatpush1.msra.mxu0 0.0
        %1280 = vmatprep.subr.mxu0 0.0
        %1281 = vmatpush1.msra.mxu0 0.0
        %1282 = vmatprep.subr.mxu0 0.0
        %1283 = vmatpush1.msra.mxu0 0.0
        %1284 = vmatprep.subr.mxu0 0.0
        %1285 = vmatpush1.msra.mxu0 0.0
        %1286 = vmatprep.subr.mxu0 0.0
        %1287 = vmatpush1.msra.mxu0 0.0
        %1288 = vmatprep.subr.mxu0 0.0
        %1289 = vmatpush1.msra.mxu0 0.0
        %1290 = vmatprep.subr.mxu0 0.0
        %1291 = vmatpush1.msra.mxu0 0.0
        %1292 = vmatprep.subr.mxu0 0.0
        %1293 = vmatpush1.msra.mxu0 0.0
        %1294 = vmatprep.subr.mxu0 0.0
        %1295 = vmatpush1.msra.mxu0 0.0
        %1296 = vmatprep.subr.mxu0 0.0
        %1297 = vmatpush1.msra.mxu0 0.0
        %1298 = vmatprep.mubr.f32.mxu0 0.0
        %1299 = vmatmul.mubr.f32.gmra.mrb[0].mxu0 %v1232
        %v1300 = vpop.f32.mrb[0].mxu0
        %v1301 = vadd.f32 %v444, %v1300
        %v1302 = vpop.f32.mrb[0].mxu0
        %1303 = vdwg.mxu0
        %v1304 = vtanh.pop %v1301
        %v1306 = vrot.slane %v1304, 1
        %v1308 = vadd.f32 %v442, %v1306
        %v1309 = vxor.u32 %v1308, 2147483648
        %v1310 = vmul.f32 %v1309, 1.442695
        %v1311 = vpow.pop %v1310
        %v1312 = vadd.f32 %v1311, 1.0
        %v1313 = vrcp.pop %v1312
        %v1314 = vmul.f32 1.0, %v1313
        %1315 = vrot.lane.b32.xlu0 %v1306, 112
        %v1316 = vpop.permute.xlu0 %1315
        %v1318 = vmul.f32 %v1314, %v1316
        %1320 = vrot.lane.b32.xlu0 %v1318, 16
        %v1321 = vpop.permute.xlu0 %1320
        %v1323 = vadd.f32 %v442, %v1321
        %v1324 = vtanh.pop %v1323
        %v1325 = vrot.slane %v1222, 7
        %v1327 = vmul.f32 %v1314, %v1325
        %v1328 = vsub.f32 1.0, %v1314
        %1330 = vrot.lane.b32.xlu0 %v1324, 120
        %v1331 = vpop.permute.xlu0 %1330
        %v1333 = vmul.f32 %v1328, %v1331
        %v1334 = vadd.f32 %v1327, %v1333
        %1336 = vrot.lane.b32.xlu0 %v1334, 120
        %v1337 = vpop.permute.xlu0 %1336
        %vm1339 = vcmask 64519
        %1340 = vst.msk [vmem:[%s323] sm:$0x80] %vm1339, %v1337
        %1341 = vst.msk [vmem:[#allocation2 - $0x7] sm:$0x80] %vm1339, %v1337
        %s1342 = sand.u32 %s200, 1
        %s1343 = scalar_lea.sflag [#allocation4], %s1342
        %s1344 = sand.u32 %s200, 1
        %s1345 = smul.addr %s1344, 8
        %s1346 = scalar_lea.vmem [#allocation3], %s1345
        // Predicated region
        $region49: #{tpu_custom_call.1} parent=43 // pred_check
          %p1347 = pneg %p210
        $region50: #{tpu_custom_call.1} parent=43 // pred_check_branch
          %1349 = sbr.rel (%p1347) target = $region52
        $region51: #{tpu_custom_call.1} parent=43 // pred_region
          %s1351 = ssub.s32 128, 128
          %1352 = vsyncadd %s1343, %s1351
          %s1353 = sadd.s32 %s25, %s24
          %s1354 = smul.addr %s1353, 128
          %s1355 = scalar_lea.hbm %s6, %s1354
          %s1357 = sshll.u32 %s1346, 4
          %s1358 = int_to_ptr.vmem [resolvable:$true] %s1357
          %1360 = dma.vmem_to_hbm [thread:$0]  %s1358, 128, %s1355, %s1343
        $region52: #{tpu_custom_call.1} parent=43 // pred_fallthru
          _
      $region44: #{tpu_custom_call.1} parent=5 // pred_fallthru
        _
      %p1361 = scmp.le.s32.totalorder 2, %s15
      // Predicated region
      $region53: #{tpu_custom_call.1} parent=5 // pred_check
        %p1362 = pneg %p1361
      $region54: #{tpu_custom_call.1} parent=5 // pred_check_branch
        %1364 = sbr.rel (%p1362) target = $region56
      $region55: #{tpu_custom_call.1} parent=5 // pred_region
        %s1365 = ssub.s32 %s15, 2
        // Predicated region
        $region57: #{tpu_custom_call.1} parent=55 // pred_check
          %p1366 = pneg %p216
        $region58: #{tpu_custom_call.1} parent=55 // pred_check_branch
          %1368 = sbr.rel (%p1366) target = $region60
        $region59: #{tpu_custom_call.1} parent=55 // pred_region
          %s1369 = sand.u32 %s201, 1
          %s1370 = scalar_lea.sflag [#allocation4], %s1369
          %s1371 = sand.u32 %s201, 1
          %s1372 = smul.addr %s1371, 8
          %s1373 = scalar_lea.vmem [#allocation3], %s1372
          %1374 = dma.done %s1370, 128
        $region60: #{tpu_custom_call.1} parent=55 // pred_fallthru
          _
      $region56: #{tpu_custom_call.1} parent=5 // pred_fallthru
        _
    $region6: #{tpu_custom_call.1} parent=1 // loop_footer
      %s19 = sadd.s32 1, %s15
    $region7: #{tpu_custom_call.1} parent=1 // loop_footer_branch
      %14 = sbr.rel target = $region3
    $region8: #{tpu_custom_call.1} parent=1 // loop_exit
      _
    %1375 = vsyncpa [#allocation4], 1
    %s1376 = scalar_lea.sflag [#allocation4], 1
    %1377 = vsyncpa %s1376, 1

</llo_original>
